<compile_context>
chip_gen: v7x
topology: tpu7x:2x2x1
jax: 0.10.0
libtpu: 0.0.40
codegen_flags: <defaults>
</compile_context>

<pallas_src>
import functools

import jax
import jax.numpy as jnp
from jax.experimental import pallas as pl
from jax.experimental.pallas import tpu as pltpu


_SQRT_HALF = 0.7071067811865476


def _gelu_exact(x):
    """Exact (erf-based) GELU matching torch.nn.GELU() default.

    erf via Abramowitz & Stegun 7.1.26 (max abs err ~1.5e-7), so the kernel
    only needs VPU + EUP ops (mul/add/where/exp).
    """
    z = x * _SQRT_HALF
    az = jnp.abs(z)
    t = 1.0 / (1.0 + 0.3275911 * az)
    poly = t * (0.254829592 + t * (-0.284496736 + t * (1.421413741
             + t * (-1.453152027 + t * 1.061405429))))
    erf_abs = 1.0 - poly * jnp.exp(-az * az)
    erf_z = jnp.where(z < 0.0, -erf_abs, erf_abs)
    return 0.5 * x * (1.0 + erf_z)


def _row_sum(x, rows):
    """Sum over the small leading (sublane) axis; unrolled VPU adds if tiny."""
    if rows <= 8:
        acc = x[0:1, :]
        for r in range(1, rows):
            acc = acc + x[r:r + 1, :]
        return acc
    return jnp.sum(x, axis=0, keepdims=True)


def _effn_kernel(x_ref, lnw_ref, lnb_ref, w1_ref, dw_ref, w2_ref, o_ref,
                 pad_ref, *, eps, H, W, C, hidden, PAD):
    HW = H * W
    x = x_ref[...].astype(jnp.float32)                       # (C, HW)

    # ---- LayerNorm over channels (sublane rows), biased variance ----
    u = _row_sum(x, C) * (1.0 / C)                           # (1, HW)
    xc = x - u
    var = _row_sum(xc * xc, C) * (1.0 / C)
    inv = jax.lax.rsqrt(var + eps)
    xa = (xc * inv) * lnw_ref[...].astype(jnp.float32) \
         + lnb_ref[...].astype(jnp.float32)                  # (C, HW)

    # ---- fc1 (1x1 conv, C -> hidden) + GELU ----
    w1 = w1_ref[...].astype(jnp.float32)                     # (hidden, C)
    y = w1[:, 0:1] * xa[0:1, :]
    for c in range(1, C):
        y = y + w1[:, c:c + 1] * xa[c:c + 1, :]
    res = _gelu_exact(y)                                     # (hidden, HW)

    # ---- 3x3 depthwise conv, padding=1 ----
    # res is placed at lane offset PAD (aligned store); the PAD-wide zero
    # borders reproduce the conv's zero padding for out-of-image taps.
    pad_ref[:, 0:PAD] = jnp.zeros((hidden, PAD), jnp.float32)
    pad_ref[:, PAD + HW:PAD + HW + PAD] = jnp.zeros((hidden, PAD), jnp.float32)
    pad_ref[:, PAD:PAD + HW] = res

    col = jax.lax.broadcasted_iota(jnp.int32, (1, HW), 1) % W
    not_first_col = (col >= 1).astype(jnp.float32)           # valid when dj = -1
    not_last_col = (col <= W - 2).astype(jnp.float32)        # valid when dj = +1

    dw = dw_ref[...].astype(jnp.float32)                     # (hidden, 9)
    z = jnp.zeros((hidden, HW), jnp.float32)
    for ki in range(3):
        for kj in range(3):
            di, dj = ki - 1, kj - 1
            shift = di * W + dj
            tap = pad_ref[:, PAD + shift:PAD + shift + HW]   # (hidden, HW)
            if dj == -1:
                tap = tap * not_first_col                    # mask row wrap
            elif dj == 1:
                tap = tap * not_last_col
            k = ki * 3 + kj
            z = z + dw[:, k:k + 1] * tap                     # per-channel scale

    z = _gelu_exact(z) + res                                 # act(dwconv) + res

    # ---- fc2 (1x1 conv, hidden -> C) ----
    w2 = w2_ref[...].astype(jnp.float32)                     # (C, hidden)
    out = w2[:, 0:1] * z[0:1, :]
    for h in range(1, hidden):
        out = out + w2[:, h:h + 1] * z[h:h + 1, :]

    o_ref[...] = out.astype(o_ref.dtype)


def effn_forward(x, ln_w, ln_b, w1, dw, w2, *, eps=1e-6):
    """Fused EFFN forward. x: (N, C, H, W) -> (N, C, H, W). dw: (hidden,1,3,3)."""
    N, C, H, W = x.shape
    hidden = w1.shape[0]
    HW = H * W
    PAD = ((W + 1 + 127) // 128) * 128   # lane-aligned zero border, >= W + 1

    x3 = x.reshape(N, C, HW)             # free reshape, no transpose
    dw2 = dw.reshape(hidden, 9)

    kernel = functools.partial(_effn_kernel, eps=eps, H=H, W=W, C=C,
                               hidden=hidden, PAD=PAD)

    out3 = pl.pallas_call(
        kernel,
        out_shape=jax.ShapeDtypeStruct((N, C, HW), x.dtype),
        grid=(N,),
        in_specs=[
            pl.BlockSpec((None, C, HW), lambda n: (n, 0, 0)),
            pl.BlockSpec((C, 1), lambda n: (0, 0)),
            pl.BlockSpec((C, 1), lambda n: (0, 0)),
            pl.BlockSpec((hidden, C), lambda n: (0, 0)),
            pl.BlockSpec((hidden, 9), lambda n: (0, 0)),
            pl.BlockSpec((C, hidden), lambda n: (0, 0)),
        ],
        out_specs=pl.BlockSpec((None, C, HW), lambda n: (n, 0, 0)),
        scratch_shapes=[pltpu.VMEM((hidden, HW + 2 * PAD), jnp.float32)],
        compiler_params=pltpu.CompilerParams(
            dimension_semantics=("parallel",)),
    )(x3, ln_w.reshape(C, 1), ln_b.reshape(C, 1), w1, dw2, w2)

    return out3.reshape(N, C, H, W)


def effn_reference(x, ln_w, ln_b, w1, dw, w2, *, eps=1e-6):
    """Pure-JAX reference matching the PyTorch EFFN forward."""
    u = jnp.mean(x, axis=1, keepdims=True)
    s = jnp.mean((x - u) ** 2, axis=1, keepdims=True)
    xn = (x - u) / jnp.sqrt(s + eps)
    xn = ln_w[None, :, None, None] * xn + ln_b[None, :, None, None]
    y = jnp.einsum('oc,nchw->nohw', w1, xn,
                   precision=jax.lax.Precision.HIGHEST)
    y = jax.nn.gelu(y, approximate=False)
    res = y
    z = jax.lax.conv_general_dilated(
        y, dw, window_strides=(1, 1), padding=((1, 1), (1, 1)),
        dimension_numbers=('NCHW', 'OIHW', 'NCHW'),
        feature_group_count=y.shape[1],
        precision=jax.lax.Precision.HIGHEST)
    z = jax.nn.gelu(z, approximate=False) + res
    return jnp.einsum('oc,nchw->nohw', w2, z,
                      precision=jax.lax.Precision.HIGHEST)


if __name__ == "__main__":
    key = jax.random.PRNGKey(0)
    N, C, H, W = 2, 4, 16, 16
    hidden = 4 * C   # mlp_ratio = 4

    kx, k1, k2, k3, k4, k5 = jax.random.split(key, 6)
    x = jax.random.normal(kx, (N, C, H, W), dtype=jnp.float32)
    # LayerNorm params (module inits to ones/zeros; perturb to exercise affine).
    ln_w = 1.0 + 0.1 * jax.random.normal(k1, (C,), dtype=jnp.float32)
    ln_b = 0.1 * jax.random.normal(k2, (C,), dtype=jnp.float32)
    # Conv weights (all convs are bias=False in the module).
    w1 = 0.5 * jax.random.normal(k3, (hidden, C), dtype=jnp.float32) / (C ** 0.5)
    dw = 0.5 * jax.random.normal(k4, (hidden, 1, 3, 3), dtype=jnp.float32) / 3.0
    w2 = 0.5 * jax.random.normal(k5, (C, hidden), dtype=jnp.float32) / (hidden ** 0.5)

    out = effn_forward(x, ln_w, ln_b, w1, dw, w2)
    out = jax.block_until_ready(out)

    ref = effn_reference(x, ln_w, ln_b, w1, dw, w2)
    assert out.shape == (N, C, H, W)
    max_err = jnp.max(jnp.abs(out - ref))
    assert jnp.allclose(out, ref, atol=5e-4, rtol=5e-4), (
        f"mismatch vs reference: max abs err = {max_err}")

    print("KERNEL_OK")
</pallas_src>

<mosaic_0001>
module attributes {stable_mosaic.version = 11 : i64} {
  func.func @_effn_kernel(%arg0: i32, %arg1: memref<1x4x256xf32, #tpu.memory_space<vmem>>, %arg2: memref<4x1xf32, #tpu.memory_space<vmem>>, %arg3: memref<4x1xf32, #tpu.memory_space<vmem>>, %arg4: memref<16x4xf32, #tpu.memory_space<vmem>>, %arg5: memref<16x9xf32, #tpu.memory_space<vmem>>, %arg6: memref<4x16xf32, #tpu.memory_space<vmem>>, %arg7: memref<1x4x256xf32, #tpu.memory_space<vmem>>, %arg8: memref<16x512xf32, #tpu.memory_space<vmem>>) attributes {dimension_semantics = [#tpu.dimension_semantics<parallel>], iteration_bounds = array<i64: 2>, scalar_prefetch = 0 : i64, scratch_operands = 1 : i64, tpu.core_type = #tpu.core_type<tc>, window_params = [{transform_indices = @transform_0, window_bounds = array<i64: 1, 4, 256>}, {pipeline_mode = #tpu.pipeline_mode<synchronous>, transform_indices = @transform_1, window_bounds = array<i64: 4, 1>}, {pipeline_mode = #tpu.pipeline_mode<synchronous>, transform_indices = @transform_2, window_bounds = array<i64: 4, 1>}, {pipeline_mode = #tpu.pipeline_mode<synchronous>, transform_indices = @transform_3, window_bounds = array<i64: 16, 4>}, {pipeline_mode = #tpu.pipeline_mode<synchronous>, transform_indices = @transform_4, window_bounds = array<i64: 16, 9>}, {pipeline_mode = #tpu.pipeline_mode<synchronous>, transform_indices = @transform_5, window_bounds = array<i64: 4, 16>}, {transform_indices = @transform_6, window_bounds = array<i64: 1, 4, 256>}]} {
    %c0 = arith.constant 0 : index
    %c0_0 = arith.constant 0 : index
    %c0_1 = arith.constant 0 : index
    %0 = vector.load %arg1[%c0, %c0_0, %c0_1] : memref<1x4x256xf32, #tpu.memory_space<vmem>>, vector<1x4x256xf32>
    %1 = vector.shape_cast %0 : vector<1x4x256xf32> to vector<4x256xf32>
    %2 = vector.extract_strided_slice %1 {offsets = [0, 0], sizes = [1, 256], strides = [1, 1]} : vector<4x256xf32> to vector<1x256xf32>
    %3 = vector.extract_strided_slice %1 {offsets = [1, 0], sizes = [1, 256], strides = [1, 1]} : vector<4x256xf32> to vector<1x256xf32>
    %4 = arith.addf %2, %3 : vector<1x256xf32>
    %5 = vector.extract_strided_slice %1 {offsets = [2, 0], sizes = [1, 256], strides = [1, 1]} : vector<4x256xf32> to vector<1x256xf32>
    %6 = arith.addf %4, %5 : vector<1x256xf32>
    %7 = vector.extract_strided_slice %1 {offsets = [3, 0], sizes = [1, 256], strides = [1, 1]} : vector<4x256xf32> to vector<1x256xf32>
    %8 = arith.addf %6, %7 : vector<1x256xf32>
    %cst = arith.constant 2.500000e-01 : f32
    %9 = vector.broadcast %cst : f32 to vector<1x256xf32>
    %10 = arith.mulf %8, %9 : vector<1x256xf32>
    %11 = vector.broadcast %10 : vector<1x256xf32> to vector<4x256xf32>
    %12 = arith.subf %1, %11 : vector<4x256xf32>
    %13 = arith.mulf %12, %12 : vector<4x256xf32>
    %14 = vector.extract_strided_slice %13 {offsets = [0, 0], sizes = [1, 256], strides = [1, 1]} : vector<4x256xf32> to vector<1x256xf32>
    %15 = vector.extract_strided_slice %13 {offsets = [1, 0], sizes = [1, 256], strides = [1, 1]} : vector<4x256xf32> to vector<1x256xf32>
    %16 = arith.addf %14, %15 : vector<1x256xf32>
    %17 = vector.extract_strided_slice %13 {offsets = [2, 0], sizes = [1, 256], strides = [1, 1]} : vector<4x256xf32> to vector<1x256xf32>
    %18 = arith.addf %16, %17 : vector<1x256xf32>
    %19 = vector.extract_strided_slice %13 {offsets = [3, 0], sizes = [1, 256], strides = [1, 1]} : vector<4x256xf32> to vector<1x256xf32>
    %20 = arith.addf %18, %19 : vector<1x256xf32>
    %cst_2 = arith.constant 2.500000e-01 : f32
    %21 = vector.broadcast %cst_2 : f32 to vector<1x256xf32>
    %22 = arith.mulf %20, %21 : vector<1x256xf32>
    %cst_3 = arith.constant 9.99999997E-7 : f32
    %23 = vector.broadcast %cst_3 : f32 to vector<1x256xf32>
    %24 = arith.addf %22, %23 : vector<1x256xf32>
    %25 = math.rsqrt %24 : vector<1x256xf32>
    %26 = vector.broadcast %25 : vector<1x256xf32> to vector<4x256xf32>
    %27 = arith.mulf %12, %26 : vector<4x256xf32>
    %c0_4 = arith.constant 0 : index
    %c0_5 = arith.constant 0 : index
    %28 = vector.load %arg2[%c0_4, %c0_5] : memref<4x1xf32, #tpu.memory_space<vmem>>, vector<4x1xf32>
    %29 = vector.broadcast %28 : vector<4x1xf32> to vector<4x256xf32>
    %30 = arith.mulf %27, %29 : vector<4x256xf32>
    %c0_6 = arith.constant 0 : index
    %c0_7 = arith.constant 0 : index
    %31 = vector.load %arg3[%c0_6, %c0_7] : memref<4x1xf32, #tpu.memory_space<vmem>>, vector<4x1xf32>
    %32 = vector.broadcast %31 : vector<4x1xf32> to vector<4x256xf32>
    %33 = arith.addf %30, %32 : vector<4x256xf32>
    %c0_8 = arith.constant 0 : index
    %c0_9 = arith.constant 0 : index
    %34 = vector.load %arg4[%c0_8, %c0_9] : memref<16x4xf32, #tpu.memory_space<vmem>>, vector<16x4xf32>
    %35 = vector.extract_strided_slice %34 {offsets = [0, 0], sizes = [16, 1], strides = [1, 1]} : vector<16x4xf32> to vector<16x1xf32>
    %36 = vector.extract_strided_slice %33 {offsets = [0, 0], sizes = [1, 256], strides = [1, 1]} : vector<4x256xf32> to vector<1x256xf32>
    %37 = vector.broadcast %35 : vector<16x1xf32> to vector<16x256xf32>
    %38 = vector.broadcast %36 : vector<1x256xf32> to vector<16x256xf32>
    %39 = arith.mulf %37, %38 : vector<16x256xf32>
    %40 = vector.extract_strided_slice %34 {offsets = [0, 1], sizes = [16, 1], strides = [1, 1]} : vector<16x4xf32> to vector<16x1xf32>
    %41 = vector.extract_strided_slice %33 {offsets = [1, 0], sizes = [1, 256], strides = [1, 1]} : vector<4x256xf32> to vector<1x256xf32>
    %42 = vector.broadcast %40 : vector<16x1xf32> to vector<16x256xf32>
    %43 = vector.broadcast %41 : vector<1x256xf32> to vector<16x256xf32>
    %44 = arith.mulf %42, %43 : vector<16x256xf32>
    %45 = arith.addf %39, %44 : vector<16x256xf32>
    %46 = vector.extract_strided_slice %34 {offsets = [0, 2], sizes = [16, 1], strides = [1, 1]} : vector<16x4xf32> to vector<16x1xf32>
    %47 = vector.extract_strided_slice %33 {offsets = [2, 0], sizes = [1, 256], strides = [1, 1]} : vector<4x256xf32> to vector<1x256xf32>
    %48 = vector.broadcast %46 : vector<16x1xf32> to vector<16x256xf32>
    %49 = vector.broadcast %47 : vector<1x256xf32> to vector<16x256xf32>
    %50 = arith.mulf %48, %49 : vector<16x256xf32>
    %51 = arith.addf %45, %50 : vector<16x256xf32>
    %52 = vector.extract_strided_slice %34 {offsets = [0, 3], sizes = [16, 1], strides = [1, 1]} : vector<16x4xf32> to vector<16x1xf32>
    %53 = vector.extract_strided_slice %33 {offsets = [3, 0], sizes = [1, 256], strides = [1, 1]} : vector<4x256xf32> to vector<1x256xf32>
    %54 = vector.broadcast %52 : vector<16x1xf32> to vector<16x256xf32>
    %55 = vector.broadcast %53 : vector<1x256xf32> to vector<16x256xf32>
    %56 = arith.mulf %54, %55 : vector<16x256xf32>
    %57 = arith.addf %51, %56 : vector<16x256xf32>
    %cst_10 = arith.constant 0.707106769 : f32
    %58 = vector.broadcast %cst_10 : f32 to vector<16x256xf32>
    %59 = arith.mulf %57, %58 : vector<16x256xf32>
    %60 = math.absf %59 : vector<16x256xf32>
    %cst_11 = arith.constant 0.327591091 : f32
    %61 = vector.broadcast %cst_11 : f32 to vector<16x256xf32>
    %62 = arith.mulf %61, %60 : vector<16x256xf32>
    %cst_12 = arith.constant 1.000000e+00 : f32
    %63 = vector.broadcast %cst_12 : f32 to vector<16x256xf32>
    %64 = arith.addf %63, %62 : vector<16x256xf32>
    %cst_13 = arith.constant 1.000000e+00 : f32
    %65 = vector.broadcast %cst_13 : f32 to vector<16x256xf32>
    %66 = arith.divf %65, %64 : vector<16x256xf32>
    %cst_14 = arith.constant 1.06140542 : f32
    %67 = vector.broadcast %cst_14 : f32 to vector<16x256xf32>
    %68 = arith.mulf %66, %67 : vector<16x256xf32>
    %cst_15 = arith.constant -1.45315206 : f32
    %69 = vector.broadcast %cst_15 : f32 to vector<16x256xf32>
    %70 = arith.addf %69, %68 : vector<16x256xf32>
    %71 = arith.mulf %66, %70 : vector<16x256xf32>
    %cst_16 = arith.constant 1.42141378 : f32
    %72 = vector.broadcast %cst_16 : f32 to vector<16x256xf32>
    %73 = arith.addf %72, %71 : vector<16x256xf32>
    %74 = arith.mulf %66, %73 : vector<16x256xf32>
    %cst_17 = arith.constant -0.284496725 : f32
    %75 = vector.broadcast %cst_17 : f32 to vector<16x256xf32>
    %76 = arith.addf %75, %74 : vector<16x256xf32>
    %77 = arith.mulf %66, %76 : vector<16x256xf32>
    %cst_18 = arith.constant 0.254829586 : f32
    %78 = vector.broadcast %cst_18 : f32 to vector<16x256xf32>
    %79 = arith.addf %78, %77 : vector<16x256xf32>
    %80 = arith.mulf %66, %79 : vector<16x256xf32>
    %cst_19 = arith.constant 0.000000e+00 : f32
    %81 = vector.broadcast %cst_19 : f32 to vector<16x256xf32>
    %82 = arith.subf %81, %60 : vector<16x256xf32>
    %83 = arith.mulf %82, %60 : vector<16x256xf32>
    %84 = math.exp %83 : vector<16x256xf32>
    %85 = arith.mulf %80, %84 : vector<16x256xf32>
    %cst_20 = arith.constant 1.000000e+00 : f32
    %86 = vector.broadcast %cst_20 : f32 to vector<16x256xf32>
    %87 = arith.subf %86, %85 : vector<16x256xf32>
    %cst_21 = arith.constant 0.000000e+00 : f32
    %88 = vector.broadcast %cst_21 : f32 to vector<16x256xf32>
    %89 = arith.cmpf olt, %59, %88 : vector<16x256xf32>
    %cst_22 = arith.constant 0.000000e+00 : f32
    %90 = vector.broadcast %cst_22 : f32 to vector<16x256xf32>
    %91 = arith.subf %90, %87 : vector<16x256xf32>
    %92 = arith.select %89, %91, %87 : vector<16x256xi1>, vector<16x256xf32>
    %cst_23 = arith.constant 5.000000e-01 : f32
    %93 = vector.broadcast %cst_23 : f32 to vector<16x256xf32>
    %94 = arith.mulf %93, %57 : vector<16x256xf32>
    %cst_24 = arith.constant 1.000000e+00 : f32
    %95 = vector.broadcast %cst_24 : f32 to vector<16x256xf32>
    %96 = arith.addf %95, %92 : vector<16x256xf32>
    %97 = arith.mulf %94, %96 : vector<16x256xf32>
    %cst_25 = arith.constant 0.000000e+00 : f32
    %98 = vector.broadcast %cst_25 : f32 to vector<16x128xf32>
    %c0_26 = arith.constant 0 : index
    %c0_27 = arith.constant 0 : index
    %99 = vector.load %arg8[%c0_26, %c0_27] : memref<16x512xf32, #tpu.memory_space<vmem>>, vector<16x128xf32>
    tpu.vector_store %arg8[%c0_26, %c0_27], %98 {strides = array<i32>} : memref<16x512xf32, #tpu.memory_space<vmem>>, vector<16x128xf32>,
    %cst_28 = arith.constant 0.000000e+00 : f32
    %100 = vector.broadcast %cst_28 : f32 to vector<16x128xf32>
    %c0_29 = arith.constant 0 : index
    %c384 = arith.constant 384 : index
    %101 = vector.load %arg8[%c0_29, %c384] : memref<16x512xf32, #tpu.memory_space<vmem>>, vector<16x128xf32>
    tpu.vector_store %arg8[%c0_29, %c384], %100 {strides = array<i32>} : memref<16x512xf32, #tpu.memory_space<vmem>>, vector<16x128xf32>,
    %c0_30 = arith.constant 0 : index
    %c128 = arith.constant 128 : index
    %102 = vector.load %arg8[%c0_30, %c128] : memref<16x512xf32, #tpu.memory_space<vmem>>, vector<16x256xf32>
    tpu.vector_store %arg8[%c0_30, %c128], %97 {strides = array<i32>} : memref<16x512xf32, #tpu.memory_space<vmem>>, vector<16x256xf32>,
    %103 = tpu.iota {dimensions = array<i32: 1>} : vector<1x256xi32>
    %c16_i32 = arith.constant 16 : i32
    %c0_i32 = arith.constant 0 : i32
    %104 = arith.cmpi eq, %c16_i32, %c0_i32 : i32
    %c1_i32 = arith.constant 1 : i32
    %105 = arith.select %104, %c1_i32, %c16_i32 : i32
    %106 = vector.broadcast %105 : i32 to vector<1x256xi32>
    %107 = arith.remsi %103, %106 : vector<1x256xi32>
    %c0_i32_31 = arith.constant 0 : i32
    %108 = vector.broadcast %c0_i32_31 : i32 to vector<1x256xi32>
    %109 = arith.cmpi ne, %107, %108 : vector<1x256xi32>
    %c0_i32_32 = arith.constant 0 : i32
    %110 = vector.broadcast %c0_i32_32 : i32 to vector<1x256xi32>
    %111 = arith.cmpi slt, %107, %110 : vector<1x256xi32>
    %c0_i32_33 = arith.constant 0 : i32
    %112 = arith.cmpi slt, %105, %c0_i32_33 : i32
    %113 = vector.broadcast %112 : i1 to vector<1x256xi1>
    %114 = vector.broadcast %113 : vector<1x256xi1> to vector<1x256xi1>
    %115 = arith.xori %111, %114 : vector<1x256xi1>
    %116 = arith.andi %115, %109 : vector<1x256xi1>
    %117 = vector.broadcast %105 : i32 to vector<1x256xi32>
    %118 = arith.addi %107, %117 : vector<1x256xi32>
    %119 = arith.select %116, %118, %107 : vector<1x256xi1>, vector<1x256xi32>
    %c1_i32_34 = arith.constant 1 : i32
    %120 = vector.broadcast %c1_i32_34 : i32 to vector<1x256xi32>
    %121 = arith.cmpi sge, %119, %120 : vector<1x256xi32>
    %122 = arith.extui %121 : vector<1x256xi1> to vector<1x256xi32>
    %123 = arith.sitofp %122 : vector<1x256xi32> to vector<1x256xf32>
    %c14_i32 = arith.constant 14 : i32
    %124 = vector.broadcast %c14_i32 : i32 to vector<1x256xi32>
    %125 = arith.cmpi sle, %119, %124 : vector<1x256xi32>
    %126 = arith.extui %125 : vector<1x256xi1> to vector<1x256xi32>
    %127 = arith.sitofp %126 : vector<1x256xi32> to vector<1x256xf32>
    %c0_35 = arith.constant 0 : index
    %c0_36 = arith.constant 0 : index
    %128 = vector.load %arg5[%c0_35, %c0_36] : memref<16x9xf32, #tpu.memory_space<vmem>>, vector<16x9xf32>
    %cst_37 = arith.constant 0.000000e+00 : f32
    %129 = vector.broadcast %cst_37 : f32 to vector<16x256xf32>
    %c0_38 = arith.constant 0 : index
    %c111 = arith.constant 111 : index
    %130 = vector.load %arg8[%c0_38, %c111] : memref<16x512xf32, #tpu.memory_space<vmem>>, vector<16x256xf32>
    %131 = vector.broadcast %123 : vector<1x256xf32> to vector<16x256xf32>
    %132 = arith.mulf %130, %131 : vector<16x256xf32>
    %133 = vector.extract_strided_slice %128 {offsets = [0, 0], sizes = [16, 1], strides = [1, 1]} : vector<16x9xf32> to vector<16x1xf32>
    %134 = vector.broadcast %133 : vector<16x1xf32> to vector<16x256xf32>
    %135 = arith.mulf %134, %132 : vector<16x256xf32>
    %136 = arith.addf %129, %135 : vector<16x256xf32>
    %c0_39 = arith.constant 0 : index
    %c112 = arith.constant 112 : index
    %137 = vector.load %arg8[%c0_39, %c112] : memref<16x512xf32, #tpu.memory_space<vmem>>, vector<16x256xf32>
    %138 = vector.extract_strided_slice %128 {offsets = [0, 1], sizes = [16, 1], strides = [1, 1]} : vector<16x9xf32> to vector<16x1xf32>
    %139 = vector.broadcast %138 : vector<16x1xf32> to vector<16x256xf32>
    %140 = arith.mulf %139, %137 : vector<16x256xf32>
    %141 = arith.addf %136, %140 : vector<16x256xf32>
    %c0_40 = arith.constant 0 : index
    %c113 = arith.constant 113 : index
    %142 = vector.load %arg8[%c0_40, %c113] : memref<16x512xf32, #tpu.memory_space<vmem>>, vector<16x256xf32>
    %143 = vector.broadcast %127 : vector<1x256xf32> to vector<16x256xf32>
    %144 = arith.mulf %142, %143 : vector<16x256xf32>
    %145 = vector.extract_strided_slice %128 {offsets = [0, 2], sizes = [16, 1], strides = [1, 1]} : vector<16x9xf32> to vector<16x1xf32>
    %146 = vector.broadcast %145 : vector<16x1xf32> to vector<16x256xf32>
    %147 = arith.mulf %146, %144 : vector<16x256xf32>
    %148 = arith.addf %141, %147 : vector<16x256xf32>
    %c0_41 = arith.constant 0 : index
    %c127 = arith.constant 127 : index
    %149 = vector.load %arg8[%c0_41, %c127] : memref<16x512xf32, #tpu.memory_space<vmem>>, vector<16x256xf32>
    %150 = vector.broadcast %123 : vector<1x256xf32> to vector<16x256xf32>
    %151 = arith.mulf %149, %150 : vector<16x256xf32>
    %152 = vector.extract_strided_slice %128 {offsets = [0, 3], sizes = [16, 1], strides = [1, 1]} : vector<16x9xf32> to vector<16x1xf32>
    %153 = vector.broadcast %152 : vector<16x1xf32> to vector<16x256xf32>
    %154 = arith.mulf %153, %151 : vector<16x256xf32>
    %155 = arith.addf %148, %154 : vector<16x256xf32>
    %c0_42 = arith.constant 0 : index
    %c128_43 = arith.constant 128 : index
    %156 = vector.load %arg8[%c0_42, %c128_43] : memref<16x512xf32, #tpu.memory_space<vmem>>, vector<16x256xf32>
    %157 = vector.extract_strided_slice %128 {offsets = [0, 4], sizes = [16, 1], strides = [1, 1]} : vector<16x9xf32> to vector<16x1xf32>
    %158 = vector.broadcast %157 : vector<16x1xf32> to vector<16x256xf32>
    %159 = arith.mulf %158, %156 : vector<16x256xf32>
    %160 = arith.addf %155, %159 : vector<16x256xf32>
    %c0_44 = arith.constant 0 : index
    %c129 = arith.constant 129 : index
    %161 = vector.load %arg8[%c0_44, %c129] : memref<16x512xf32, #tpu.memory_space<vmem>>, vector<16x256xf32>
    %162 = vector.broadcast %127 : vector<1x256xf32> to vector<16x256xf32>
    %163 = arith.mulf %161, %162 : vector<16x256xf32>
    %164 = vector.extract_strided_slice %128 {offsets = [0, 5], sizes = [16, 1], strides = [1, 1]} : vector<16x9xf32> to vector<16x1xf32>
    %165 = vector.broadcast %164 : vector<16x1xf32> to vector<16x256xf32>
    %166 = arith.mulf %165, %163 : vector<16x256xf32>
    %167 = arith.addf %160, %166 : vector<16x256xf32>
    %c0_45 = arith.constant 0 : index
    %c143 = arith.constant 143 : index
    %168 = vector.load %arg8[%c0_45, %c143] : memref<16x512xf32, #tpu.memory_space<vmem>>, vector<16x256xf32>
    %169 = vector.broadcast %123 : vector<1x256xf32> to vector<16x256xf32>
    %170 = arith.mulf %168, %169 : vector<16x256xf32>
    %171 = vector.extract_strided_slice %128 {offsets = [0, 6], sizes = [16, 1], strides = [1, 1]} : vector<16x9xf32> to vector<16x1xf32>
    %172 = vector.broadcast %171 : vector<16x1xf32> to vector<16x256xf32>
    %173 = arith.mulf %172, %170 : vector<16x256xf32>
    %174 = arith.addf %167, %173 : vector<16x256xf32>
    %c0_46 = arith.constant 0 : index
    %c144 = arith.constant 144 : index
    %175 = vector.load %arg8[%c0_46, %c144] : memref<16x512xf32, #tpu.memory_space<vmem>>, vector<16x256xf32>
    %176 = vector.extract_strided_slice %128 {offsets = [0, 7], sizes = [16, 1], strides = [1, 1]} : vector<16x9xf32> to vector<16x1xf32>
    %177 = vector.broadcast %176 : vector<16x1xf32> to vector<16x256xf32>
    %178 = arith.mulf %177, %175 : vector<16x256xf32>
    %179 = arith.addf %174, %178 : vector<16x256xf32>
    %c0_47 = arith.constant 0 : index
    %c145 = arith.constant 145 : index
    %180 = vector.load %arg8[%c0_47, %c145] : memref<16x512xf32, #tpu.memory_space<vmem>>, vector<16x256xf32>
    %181 = vector.broadcast %127 : vector<1x256xf32> to vector<16x256xf32>
    %182 = arith.mulf %180, %181 : vector<16x256xf32>
    %183 = vector.extract_strided_slice %128 {offsets = [0, 8], sizes = [16, 1], strides = [1, 1]} : vector<16x9xf32> to vector<16x1xf32>
    %184 = vector.broadcast %183 : vector<16x1xf32> to vector<16x256xf32>
    %185 = arith.mulf %184, %182 : vector<16x256xf32>
    %186 = arith.addf %179, %185 : vector<16x256xf32>
    %cst_48 = arith.constant 0.707106769 : f32
    %187 = vector.broadcast %cst_48 : f32 to vector<16x256xf32>
    %188 = arith.mulf %186, %187 : vector<16x256xf32>
    %189 = math.absf %188 : vector<16x256xf32>
    %cst_49 = arith.constant 0.327591091 : f32
    %190 = vector.broadcast %cst_49 : f32 to vector<16x256xf32>
    %191 = arith.mulf %190, %189 : vector<16x256xf32>
    %cst_50 = arith.constant 1.000000e+00 : f32
    %192 = vector.broadcast %cst_50 : f32 to vector<16x256xf32>
    %193 = arith.addf %192, %191 : vector<16x256xf32>
    %cst_51 = arith.constant 1.000000e+00 : f32
    %194 = vector.broadcast %cst_51 : f32 to vector<16x256xf32>
    %195 = arith.divf %194, %193 : vector<16x256xf32>
    %cst_52 = arith.constant 1.06140542 : f32
    %196 = vector.broadcast %cst_52 : f32 to vector<16x256xf32>
    %197 = arith.mulf %195, %196 : vector<16x256xf32>
    %cst_53 = arith.constant -1.45315206 : f32
    %198 = vector.broadcast %cst_53 : f32 to vector<16x256xf32>
    %199 = arith.addf %198, %197 : vector<16x256xf32>
    %200 = arith.mulf %195, %199 : vector<16x256xf32>
    %cst_54 = arith.constant 1.42141378 : f32
    %201 = vector.broadcast %cst_54 : f32 to vector<16x256xf32>
    %202 = arith.addf %201, %200 : vector<16x256xf32>
    %203 = arith.mulf %195, %202 : vector<16x256xf32>
    %cst_55 = arith.constant -0.284496725 : f32
    %204 = vector.broadcast %cst_55 : f32 to vector<16x256xf32>
    %205 = arith.addf %204, %203 : vector<16x256xf32>
    %206 = arith.mulf %195, %205 : vector<16x256xf32>
    %cst_56 = arith.constant 0.254829586 : f32
    %207 = vector.broadcast %cst_56 : f32 to vector<16x256xf32>
    %208 = arith.addf %207, %206 : vector<16x256xf32>
    %209 = arith.mulf %195, %208 : vector<16x256xf32>
    %cst_57 = arith.constant 0.000000e+00 : f32
    %210 = vector.broadcast %cst_57 : f32 to vector<16x256xf32>
    %211 = arith.subf %210, %189 : vector<16x256xf32>
    %212 = arith.mulf %211, %189 : vector<16x256xf32>
    %213 = math.exp %212 : vector<16x256xf32>
    %214 = arith.mulf %209, %213 : vector<16x256xf32>
    %cst_58 = arith.constant 1.000000e+00 : f32
    %215 = vector.broadcast %cst_58 : f32 to vector<16x256xf32>
    %216 = arith.subf %215, %214 : vector<16x256xf32>
    %cst_59 = arith.constant 0.000000e+00 : f32
    %217 = vector.broadcast %cst_59 : f32 to vector<16x256xf32>
    %218 = arith.cmpf olt, %188, %217 : vector<16x256xf32>
    %cst_60 = arith.constant 0.000000e+00 : f32
    %219 = vector.broadcast %cst_60 : f32 to vector<16x256xf32>
    %220 = arith.subf %219, %216 : vector<16x256xf32>
    %221 = arith.select %218, %220, %216 : vector<16x256xi1>, vector<16x256xf32>
    %cst_61 = arith.constant 5.000000e-01 : f32
    %222 = vector.broadcast %cst_61 : f32 to vector<16x256xf32>
    %223 = arith.mulf %222, %186 : vector<16x256xf32>
    %cst_62 = arith.constant 1.000000e+00 : f32
    %224 = vector.broadcast %cst_62 : f32 to vector<16x256xf32>
    %225 = arith.addf %224, %221 : vector<16x256xf32>
    %226 = arith.mulf %223, %225 : vector<16x256xf32>
    %227 = arith.addf %226, %97 : vector<16x256xf32>
    %c0_63 = arith.constant 0 : index
    %c0_64 = arith.constant 0 : index
    %228 = vector.load %arg6[%c0_63, %c0_64] : memref<4x16xf32, #tpu.memory_space<vmem>>, vector<4x16xf32>
    %229 = vector.extract_strided_slice %228 {offsets = [0, 0], sizes = [4, 1], strides = [1, 1]} : vector<4x16xf32> to vector<4x1xf32>
    %230 = vector.extract_strided_slice %227 {offsets = [0, 0], sizes = [1, 256], strides = [1, 1]} : vector<16x256xf32> to vector<1x256xf32>
    %231 = vector.broadcast %229 : vector<4x1xf32> to vector<4x256xf32>
    %232 = vector.broadcast %230 : vector<1x256xf32> to vector<4x256xf32>
    %233 = arith.mulf %231, %232 : vector<4x256xf32>
    %234 = vector.extract_strided_slice %228 {offsets = [0, 1], sizes = [4, 1], strides = [1, 1]} : vector<4x16xf32> to vector<4x1xf32>
    %235 = vector.extract_strided_slice %227 {offsets = [1, 0], sizes = [1, 256], strides = [1, 1]} : vector<16x256xf32> to vector<1x256xf32>
    %236 = vector.broadcast %234 : vector<4x1xf32> to vector<4x256xf32>
    %237 = vector.broadcast %235 : vector<1x256xf32> to vector<4x256xf32>
    %238 = arith.mulf %236, %237 : vector<4x256xf32>
    %239 = arith.addf %233, %238 : vector<4x256xf32>
    %240 = vector.extract_strided_slice %228 {offsets = [0, 2], sizes = [4, 1], strides = [1, 1]} : vector<4x16xf32> to vector<4x1xf32>
    %241 = vector.extract_strided_slice %227 {offsets = [2, 0], sizes = [1, 256], strides = [1, 1]} : vector<16x256xf32> to vector<1x256xf32>
    %242 = vector.broadcast %240 : vector<4x1xf32> to vector<4x256xf32>
    %243 = vector.broadcast %241 : vector<1x256xf32> to vector<4x256xf32>
    %244 = arith.mulf %242, %243 : vector<4x256xf32>
    %245 = arith.addf %239, %244 : vector<4x256xf32>
    %246 = vector.extract_strided_slice %228 {offsets = [0, 3], sizes = [4, 1], strides = [1, 1]} : vector<4x16xf32> to vector<4x1xf32>
    %247 = vector.extract_strided_slice %227 {offsets = [3, 0], sizes = [1, 256], strides = [1, 1]} : vector<16x256xf32> to vector<1x256xf32>
    %248 = vector.broadcast %246 : vector<4x1xf32> to vector<4x256xf32>
    %249 = vector.broadcast %247 : vector<1x256xf32> to vector<4x256xf32>
    %250 = arith.mulf %248, %249 : vector<4x256xf32>
    %251 = arith.addf %245, %250 : vector<4x256xf32>
    %252 = vector.extract_strided_slice %228 {offsets = [0, 4], sizes = [4, 1], strides = [1, 1]} : vector<4x16xf32> to vector<4x1xf32>
    %253 = vector.extract_strided_slice %227 {offsets = [4, 0], sizes = [1, 256], strides = [1, 1]} : vector<16x256xf32> to vector<1x256xf32>
    %254 = vector.broadcast %252 : vector<4x1xf32> to vector<4x256xf32>
    %255 = vector.broadcast %253 : vector<1x256xf32> to vector<4x256xf32>
    %256 = arith.mulf %254, %255 : vector<4x256xf32>
    %257 = arith.addf %251, %256 : vector<4x256xf32>
    %258 = vector.extract_strided_slice %228 {offsets = [0, 5], sizes = [4, 1], strides = [1, 1]} : vector<4x16xf32> to vector<4x1xf32>
    %259 = vector.extract_strided_slice %227 {offsets = [5, 0], sizes = [1, 256], strides = [1, 1]} : vector<16x256xf32> to vector<1x256xf32>
    %260 = vector.broadcast %258 : vector<4x1xf32> to vector<4x256xf32>
    %261 = vector.broadcast %259 : vector<1x256xf32> to vector<4x256xf32>
    %262 = arith.mulf %260, %261 : vector<4x256xf32>
    %263 = arith.addf %257, %262 : vector<4x256xf32>
    %264 = vector.extract_strided_slice %228 {offsets = [0, 6], sizes = [4, 1], strides = [1, 1]} : vector<4x16xf32> to vector<4x1xf32>
    %265 = vector.extract_strided_slice %227 {offsets = [6, 0], sizes = [1, 256], strides = [1, 1]} : vector<16x256xf32> to vector<1x256xf32>
    %266 = vector.broadcast %264 : vector<4x1xf32> to vector<4x256xf32>
    %267 = vector.broadcast %265 : vector<1x256xf32> to vector<4x256xf32>
    %268 = arith.mulf %266, %267 : vector<4x256xf32>
    %269 = arith.addf %263, %268 : vector<4x256xf32>
    %270 = vector.extract_strided_slice %228 {offsets = [0, 7], sizes = [4, 1], strides = [1, 1]} : vector<4x16xf32> to vector<4x1xf32>
    %271 = vector.extract_strided_slice %227 {offsets = [7, 0], sizes = [1, 256], strides = [1, 1]} : vector<16x256xf32> to vector<1x256xf32>
    %272 = vector.broadcast %270 : vector<4x1xf32> to vector<4x256xf32>
    %273 = vector.broadcast %271 : vector<1x256xf32> to vector<4x256xf32>
    %274 = arith.mulf %272, %273 : vector<4x256xf32>
    %275 = arith.addf %269, %274 : vector<4x256xf32>
    %276 = vector.extract_strided_slice %228 {offsets = [0, 8], sizes = [4, 1], strides = [1, 1]} : vector<4x16xf32> to vector<4x1xf32>
    %277 = vector.extract_strided_slice %227 {offsets = [8, 0], sizes = [1, 256], strides = [1, 1]} : vector<16x256xf32> to vector<1x256xf32>
    %278 = vector.broadcast %276 : vector<4x1xf32> to vector<4x256xf32>
    %279 = vector.broadcast %277 : vector<1x256xf32> to vector<4x256xf32>
    %280 = arith.mulf %278, %279 : vector<4x256xf32>
    %281 = arith.addf %275, %280 : vector<4x256xf32>
    %282 = vector.extract_strided_slice %228 {offsets = [0, 9], sizes = [4, 1], strides = [1, 1]} : vector<4x16xf32> to vector<4x1xf32>
    %283 = vector.extract_strided_slice %227 {offsets = [9, 0], sizes = [1, 256], strides = [1, 1]} : vector<16x256xf32> to vector<1x256xf32>
    %284 = vector.broadcast %282 : vector<4x1xf32> to vector<4x256xf32>
    %285 = vector.broadcast %283 : vector<1x256xf32> to vector<4x256xf32>
    %286 = arith.mulf %284, %285 : vector<4x256xf32>
    %287 = arith.addf %281, %286 : vector<4x256xf32>
    %288 = vector.extract_strided_slice %228 {offsets = [0, 10], sizes = [4, 1], strides = [1, 1]} : vector<4x16xf32> to vector<4x1xf32>
    %289 = vector.extract_strided_slice %227 {offsets = [10, 0], sizes = [1, 256], strides = [1, 1]} : vector<16x256xf32> to vector<1x256xf32>
    %290 = vector.broadcast %288 : vector<4x1xf32> to vector<4x256xf32>
    %291 = vector.broadcast %289 : vector<1x256xf32> to vector<4x256xf32>
    %292 = arith.mulf %290, %291 : vector<4x256xf32>
    %293 = arith.addf %287, %292 : vector<4x256xf32>
    %294 = vector.extract_strided_slice %228 {offsets = [0, 11], sizes = [4, 1], strides = [1, 1]} : vector<4x16xf32> to vector<4x1xf32>
    %295 = vector.extract_strided_slice %227 {offsets = [11, 0], sizes = [1, 256], strides = [1, 1]} : vector<16x256xf32> to vector<1x256xf32>
    %296 = vector.broadcast %294 : vector<4x1xf32> to vector<4x256xf32>
    %297 = vector.broadcast %295 : vector<1x256xf32> to vector<4x256xf32>
    %298 = arith.mulf %296, %297 : vector<4x256xf32>
    %299 = arith.addf %293, %298 : vector<4x256xf32>
    %300 = vector.extract_strided_slice %228 {offsets = [0, 12], sizes = [4, 1], strides = [1, 1]} : vector<4x16xf32> to vector<4x1xf32>
    %301 = vector.extract_strided_slice %227 {offsets = [12, 0], sizes = [1, 256], strides = [1, 1]} : vector<16x256xf32> to vector<1x256xf32>
    %302 = vector.broadcast %300 : vector<4x1xf32> to vector<4x256xf32>
    %303 = vector.broadcast %301 : vector<1x256xf32> to vector<4x256xf32>
    %304 = arith.mulf %302, %303 : vector<4x256xf32>
    %305 = arith.addf %299, %304 : vector<4x256xf32>
    %306 = vector.extract_strided_slice %228 {offsets = [0, 13], sizes = [4, 1], strides = [1, 1]} : vector<4x16xf32> to vector<4x1xf32>
    %307 = vector.extract_strided_slice %227 {offsets = [13, 0], sizes = [1, 256], strides = [1, 1]} : vector<16x256xf32> to vector<1x256xf32>
    %308 = vector.broadcast %306 : vector<4x1xf32> to vector<4x256xf32>
    %309 = vector.broadcast %307 : vector<1x256xf32> to vector<4x256xf32>
    %310 = arith.mulf %308, %309 : vector<4x256xf32>
    %311 = arith.addf %305, %310 : vector<4x256xf32>
    %312 = vector.extract_strided_slice %228 {offsets = [0, 14], sizes = [4, 1], strides = [1, 1]} : vector<4x16xf32> to vector<4x1xf32>
    %313 = vector.extract_strided_slice %227 {offsets = [14, 0], sizes = [1, 256], strides = [1, 1]} : vector<16x256xf32> to vector<1x256xf32>
    %314 = vector.broadcast %312 : vector<4x1xf32> to vector<4x256xf32>
    %315 = vector.broadcast %313 : vector<1x256xf32> to vector<4x256xf32>
    %316 = arith.mulf %314, %315 : vector<4x256xf32>
    %317 = arith.addf %311, %316 : vector<4x256xf32>
    %318 = vector.extract_strided_slice %228 {offsets = [0, 15], sizes = [4, 1], strides = [1, 1]} : vector<4x16xf32> to vector<4x1xf32>
    %319 = vector.extract_strided_slice %227 {offsets = [15, 0], sizes = [1, 256], strides = [1, 1]} : vector<16x256xf32> to vector<1x256xf32>
    %320 = vector.broadcast %318 : vector<4x1xf32> to vector<4x256xf32>
    %321 = vector.broadcast %319 : vector<1x256xf32> to vector<4x256xf32>
    %322 = arith.mulf %320, %321 : vector<4x256xf32>
    %323 = arith.addf %317, %322 : vector<4x256xf32>
    %c0_65 = arith.constant 0 : index
    %c0_66 = arith.constant 0 : index
    %c0_67 = arith.constant 0 : index
    %324 = vector.load %arg7[%c0_65, %c0_66, %c0_67] : memref<1x4x256xf32, #tpu.memory_space<vmem>>, vector<1x4x256xf32>
    %325 = vector.shape_cast %324 : vector<1x4x256xf32> to vector<4x256xf32>
    %326 = vector.shape_cast %323 : vector<4x256xf32> to vector<1x4x256xf32>
    tpu.vector_store %arg7[%c0_65, %c0_66, %c0_67], %326 {strides = array<i32>} : memref<1x4x256xf32, #tpu.memory_space<vmem>>, vector<1x4x256xf32>,
    return
  }
  func.func @transform_0(%arg0: i32) -> (i32, i32, i32) {
    %c0_i32 = arith.constant 0 : i32
    %c0_i32_0 = arith.constant 0 : i32
    %c0_i32_1 = arith.constant 0 : i32
    return %arg0, %c0_i32, %c0_i32_0 : i32, i32, i32
  }
  func.func @transform_1(%arg0: i32) -> (i32, i32) {
    %c0_i32 = arith.constant 0 : i32
    %c0_i32_0 = arith.constant 0 : i32
    %c0_i32_1 = arith.constant 0 : i32
    return %c0_i32, %c0_i32_0 : i32, i32
  }
  func.func @transform_2(%arg0: i32) -> (i32, i32) {
    %c0_i32 = arith.constant 0 : i32
    %c0_i32_0 = arith.constant 0 : i32
    %c0_i32_1 = arith.constant 0 : i32
    return %c0_i32, %c0_i32_0 : i32, i32
  }
  func.func @transform_3(%arg0: i32) -> (i32, i32) {
    %c0_i32 = arith.constant 0 : i32
    %c0_i32_0 = arith.constant 0 : i32
    %c0_i32_1 = arith.constant 0 : i32
    return %c0_i32, %c0_i32_0 : i32, i32
  }
  func.func @transform_4(%arg0: i32) -> (i32, i32) {
    %c0_i32 = arith.constant 0 : i32
    %c0_i32_0 = arith.constant 0 : i32
    %c0_i32_1 = arith.constant 0 : i32
    return %c0_i32, %c0_i32_0 : i32, i32
  }
  func.func @transform_5(%arg0: i32) -> (i32, i32) {
    %c0_i32 = arith.constant 0 : i32
    %c0_i32_0 = arith.constant 0 : i32
    %c0_i32_1 = arith.constant 0 : i32
    return %c0_i32, %c0_i32_0 : i32, i32
  }
  func.func @transform_6(%arg0: i32) -> (i32, i32, i32) {
    %c0_i32 = arith.constant 0 : i32
    %c0_i32_0 = arith.constant 0 : i32
    %c0_i32_1 = arith.constant 0 : i32
    return %arg0, %c0_i32, %c0_i32_0 : i32, i32, i32
  }
}

</mosaic_0001>

<llo_original>
// kernel: tpu_custom_call.1
$region0: #{tpu_custom_call.1}
  #allocation0 [shape = 'u32[]', space=smem, size = 0x4, offset = 0x4, fixed_abs, tag = 'smem constant byte address 0x4 - core index']
  #allocation1 [shape = 'u32[144,128]{1,0:T(1,128)}', space=vmem, size = 0x12000, scoped, tag = 'internal scratch']
  #allocation2 [shape = 'f32[16,512]{1,0:T(8,128)}', space=vmem, size = 0x8000, scoped, tag = 'scratch operand']
  %s0 = inlined_call_operand.vmem [shape: f32[2,4,256], index: 0, kind: input, shape index: {}]
  %s1 = inlined_call_operand.vmem [shape: f32[4,1], index: 1, kind: input, shape index: {}]
  %s2 = inlined_call_operand.vmem [shape: f32[4,1], index: 2, kind: input, shape index: {}]
  %s3 = inlined_call_operand.vmem [shape: f32[16,4], index: 3, kind: input, shape index: {}]
  %s4 = inlined_call_operand.vmem [shape: f32[16,9], index: 4, kind: input, shape index: {}]
  %s5 = inlined_call_operand.vmem [shape: f32[4,16], index: 5, kind: input, shape index: {}]
  %s6 = inlined_call_operand.hbm [shape: f32[2,4,256], index: 6, kind: output, shape index: {}]
  %s7 = sld [smem:[#allocation0]]
  $region57: #{tpu_custom_call.1} parent=0
    _
  %s9 = ssub.s32 1, %s7
  %s10 = scalar_select 0, %s9, %s7
  $region1: #{tpu_custom_call.1} parent=0
    #allocation3 [shape = 'u8[8192]{0}', space=vmem, size = 0x2000, scoped, tag = 'output window, operand 0']
    #allocation4 [shape = 's32[2]{0}', space=sflag, size = 0x8, scoped, tag = 'scoped memory for tpu_custom_call.1']
    %11 = vsyncpa [#allocation4], 0
    %s12 = scalar_lea.sflag [#allocation4], 1
    %13 = vsyncpa %s12, 0
    loop: start=0, step=1, limit=4
    $region2: #{tpu_custom_call.1} parent=1 // loop_pre_header
      _
    $region3: #{tpu_custom_call.1} parent=1 // loop_header
      %s15 = sphi 0, %s19
      %p16 = scmp.ge.s32.totalorder %s15, 4
      %s25 = sphi 0, %s27
      %s28 = sphi 0, %s25
      %s29 = sphi 0, %s28
      %s45 = sphi 0, %s29
      %s49 = sphi 0, %s49
      %s51 = sphi 0, %s49
      %s52 = sphi 0, %s51
      %s66 = sphi 0, %s52
      %s70 = sphi 0, %s70
      %s72 = sphi 0, %s70
      %s73 = sphi 0, %s72
      %s87 = sphi 0, %s73
      %s91 = sphi 0, %s91
      %s93 = sphi 0, %s91
      %s94 = sphi 0, %s93
      %s108 = sphi 0, %s94
      %s112 = sphi 0, %s112
      %s114 = sphi 0, %s112
      %s115 = sphi 0, %s114
      %s129 = sphi 0, %s115
      %s133 = sphi 0, %s133
      %s135 = sphi 0, %s133
      %s136 = sphi 0, %s135
      %s150 = sphi 0, %s136
      %s156 = sphi 0, %s158
      %s159 = sphi 0, %s156
      %s160 = sphi 0, %s159
      %s176 = sphi 0, %s160
    $region4: #{tpu_custom_call.1} parent=1 // loop_header_branch
      %18 = sbr.rel (%p16) target = $region8
    $region5: #{tpu_custom_call.1} parent=1 // loop_body
      %s20 = ssub.s32 %s15, 1
      %s21 = ssub.s32 %s15, 2
      %s22 = sadd.s32 %s15, 1
      %s23 = ssub.s32 %s15, %s22
      %p24 = scmp.eq.s32.totalorder %s23, 0
      %s26 = sadd.s32 %s25, 1
      %s27 = scalar_select %p24, %s25, %s26
      %p30 = pneg %p24
      %p31 = scmp.eq.s32.totalorder %s15, 1
      %p32 = por %p30, %p31
      %p33 = scmp.ne.s32.totalorder %s25, %s28
      %p34 = scmp.eq.s32.totalorder %s15, 0
      %p35 = por %p33, %p34
      %p36 = scmp.ne.s32.totalorder %s25, %s28
      %p37 = scmp.eq.s32.totalorder %s20, 1
      %p38 = por %p36, %p37
      %p39 = scmp.ne.s32.totalorder %s28, %s29
      %p40 = scmp.eq.s32.totalorder %s20, 0
      %p41 = por %p39, %p40
      %p42 = scmp.ne.s32.totalorder %s28, %s29
      %p43 = scmp.eq.s32.totalorder %s21, 1
      %p44 = por %p42, %p43
      %p46 = scmp.ne.s32.totalorder %s29, %s45
      %p47 = scmp.eq.s32.totalorder %s21, 0
      %p48 = por %p46, %p47
      %s50 = sadd.s32 %s49, 1
      %p53 = scmp.eq.s32.totalorder %s15, 1
      %p54 = scmp.ne.s32.totalorder %s49, %s51
      %p55 = scmp.eq.s32.totalorder %s15, 0
      %p56 = por %p54, %p55
      %p57 = scmp.ne.s32.totalorder %s49, %s51
      %p58 = scmp.eq.s32.totalorder %s20, 1
      %p59 = por %p57, %p58
      %p60 = scmp.ne.s32.totalorder %s51, %s52
      %p61 = scmp.eq.s32.totalorder %s20, 0
      %p62 = por %p60, %p61
      %p63 = scmp.ne.s32.totalorder %s51, %s52
      %p64 = scmp.eq.s32.totalorder %s21, 1
      %p65 = por %p63, %p64
      %p67 = scmp.ne.s32.totalorder %s52, %s66
      %p68 = scmp.eq.s32.totalorder %s21, 0
      %p69 = por %p67, %p68
      %s71 = sadd.s32 %s70, 1
      %p74 = scmp.eq.s32.totalorder %s15, 1
      %p75 = scmp.ne.s32.totalorder %s70, %s72
      %p76 = scmp.eq.s32.totalorder %s15, 0
      %p77 = por %p75, %p76
      %p78 = scmp.ne.s32.totalorder %s70, %s72
      %p79 = scmp.eq.s32.totalorder %s20, 1
      %p80 = por %p78, %p79
      %p81 = scmp.ne.s32.totalorder %s72, %s73
      %p82 = scmp.eq.s32.totalorder %s20, 0
      %p83 = por %p81, %p82
      %p84 = scmp.ne.s32.totalorder %s72, %s73
      %p85 = scmp.eq.s32.totalorder %s21, 1
      %p86 = por %p84, %p85
      %p88 = scmp.ne.s32.totalorder %s73, %s87
      %p89 = scmp.eq.s32.totalorder %s21, 0
      %p90 = por %p88, %p89
      %s92 = sadd.s32 %s91, 1
      %p95 = scmp.eq.s32.totalorder %s15, 1
      %p96 = scmp.ne.s32.totalorder %s91, %s93
      %p97 = scmp.eq.s32.totalorder %s15, 0
      %p98 = por %p96, %p97
      %p99 = scmp.ne.s32.totalorder %s91, %s93
      %p100 = scmp.eq.s32.totalorder %s20, 1
      %p101 = por %p99, %p100
      %p102 = scmp.ne.s32.totalorder %s93, %s94
      %p103 = scmp.eq.s32.totalorder %s20, 0
      %p104 = por %p102, %p103
      %p105 = scmp.ne.s32.totalorder %s93, %s94
      %p106 = scmp.eq.s32.totalorder %s21, 1
      %p107 = por %p105, %p106
      %p109 = scmp.ne.s32.totalorder %s94, %s108
      %p110 = scmp.eq.s32.totalorder %s21, 0
      %p111 = por %p109, %p110
      %s113 = sadd.s32 %s112, 1
      %p116 = scmp.eq.s32.totalorder %s15, 1
      %p117 = scmp.ne.s32.totalorder %s112, %s114
      %p118 = scmp.eq.s32.totalorder %s15, 0
      %p119 = por %p117, %p118
      %p120 = scmp.ne.s32.totalorder %s112, %s114
      %p121 = scmp.eq.s32.totalorder %s20, 1
      %p122 = por %p120, %p121
      %p123 = scmp.ne.s32.totalorder %s114, %s115
      %p124 = scmp.eq.s32.totalorder %s20, 0
      %p125 = por %p123, %p124
      %p126 = scmp.ne.s32.totalorder %s114, %s115
      %p127 = scmp.eq.s32.totalorder %s21, 1
      %p128 = por %p126, %p127
      %p130 = scmp.ne.s32.totalorder %s115, %s129
      %p131 = scmp.eq.s32.totalorder %s21, 0
      %p132 = por %p130, %p131
      %s134 = sadd.s32 %s133, 1
      %p137 = scmp.eq.s32.totalorder %s15, 1
      %p138 = scmp.ne.s32.totalorder %s133, %s135
      %p139 = scmp.eq.s32.totalorder %s15, 0
      %p140 = por %p138, %p139
      %p141 = scmp.ne.s32.totalorder %s133, %s135
      %p142 = scmp.eq.s32.totalorder %s20, 1
      %p143 = por %p141, %p142
      %p144 = scmp.ne.s32.totalorder %s135, %s136
      %p145 = scmp.eq.s32.totalorder %s20, 0
      %p146 = por %p144, %p145
      %p147 = scmp.ne.s32.totalorder %s135, %s136
      %p148 = scmp.eq.s32.totalorder %s21, 1
      %p149 = por %p147, %p148
      %p151 = scmp.ne.s32.totalorder %s136, %s150
      %p152 = scmp.eq.s32.totalorder %s21, 0
      %p153 = por %p151, %p152
      %s154 = ssub.s32 %s15, %s22
      %p155 = scmp.eq.s32.totalorder %s154, 0
      %s157 = sadd.s32 %s156, 1
      %s158 = scalar_select %p155, %s156, %s157
      %p161 = pneg %p155
      %p162 = scmp.eq.s32.totalorder %s15, 1
      %p163 = por %p161, %p162
      %p164 = scmp.ne.s32.totalorder %s156, %s159
      %p165 = scmp.eq.s32.totalorder %s15, 0
      %p166 = por %p164, %p165
      %p167 = scmp.ne.s32.totalorder %s156, %s159
      %p168 = scmp.eq.s32.totalorder %s20, 1
      %p169 = por %p167, %p168
      %p170 = scmp.ne.s32.totalorder %s159, %s160
      %p171 = scmp.eq.s32.totalorder %s20, 0
      %p172 = por %p170, %p171
      %p173 = scmp.ne.s32.totalorder %s159, %s160
      %p174 = scmp.eq.s32.totalorder %s21, 1
      %p175 = por %p173, %p174
      %p177 = scmp.ne.s32.totalorder %s160, %s176
      %p178 = scmp.eq.s32.totalorder %s21, 0
      %p179 = por %p177, %p178
      %p180 = scmp.le.s32.totalorder 1, %s15
      %p181 = scmp.lt.s32.totalorder %s15, 3
      %p182 = pnand %p180, %p181
      %p183 = pneg %p182
      // Predicated region
      $region9: #{tpu_custom_call.1} parent=5 // pred_check
        _
      $region10: #{tpu_custom_call.1} parent=5 // pred_check_branch
        %185 = sbr.rel (%p182) target = $region12
      $region11: #{tpu_custom_call.1} parent=5 // pred_region
        %s186 = ssub.s32 %s15, 1
        // Predicated region
        $region13: #{tpu_custom_call.1} parent=11 // pred_check
          %p187 = pneg %p62
        $region14: #{tpu_custom_call.1} parent=11 // pred_check_branch
          %189 = sbr.rel (%p187) target = $region16
        $region15: #{tpu_custom_call.1} parent=11 // pred_region
          _
        $region16: #{tpu_custom_call.1} parent=11 // pred_fallthru
          _
        // Predicated region
        $region17: #{tpu_custom_call.1} parent=11 // pred_check
          %p190 = pneg %p83
        $region18: #{tpu_custom_call.1} parent=11 // pred_check_branch
          %192 = sbr.rel (%p190) target = $region20
        $region19: #{tpu_custom_call.1} parent=11 // pred_region
          _
        $region20: #{tpu_custom_call.1} parent=11 // pred_fallthru
          _
        // Predicated region
        $region21: #{tpu_custom_call.1} parent=11 // pred_check
          %p193 = pneg %p104
        $region22: #{tpu_custom_call.1} parent=11 // pred_check_branch
          %195 = sbr.rel (%p193) target = $region24
        $region23: #{tpu_custom_call.1} parent=11 // pred_region
          _
        $region24: #{tpu_custom_call.1} parent=11 // pred_fallthru
          _
        // Predicated region
        $region25: #{tpu_custom_call.1} parent=11 // pred_check
          %p196 = pneg %p125
        $region26: #{tpu_custom_call.1} parent=11 // pred_check_branch
          %198 = sbr.rel (%p196) target = $region28
        $region27: #{tpu_custom_call.1} parent=11 // pred_region
          _
        $region28: #{tpu_custom_call.1} parent=11 // pred_fallthru
          _
        // Predicated region
        $region29: #{tpu_custom_call.1} parent=11 // pred_check
          %p199 = pneg %p146
        $region30: #{tpu_custom_call.1} parent=11 // pred_check_branch
          %201 = sbr.rel (%p199) target = $region32
        $region31: #{tpu_custom_call.1} parent=11 // pred_region
          _
        $region32: #{tpu_custom_call.1} parent=11 // pred_fallthru
          _
      $region12: #{tpu_custom_call.1} parent=5 // pred_fallthru
        _
      %p202 = scmp.lt.s32.totalorder %s15, 2
      // Predicated region
      $region33: #{tpu_custom_call.1} parent=5 // pred_check
        %p203 = pneg %p202
      $region34: #{tpu_custom_call.1} parent=5 // pred_check_branch
        %205 = sbr.rel (%p203) target = $region36
      $region35: #{tpu_custom_call.1} parent=5 // pred_region
        // Predicated region
        $region37: #{tpu_custom_call.1} parent=35 // pred_check
          %p206 = pneg %p35
        $region38: #{tpu_custom_call.1} parent=35 // pred_check_branch
          %208 = sbr.rel (%p206) target = $region40
        $region39: #{tpu_custom_call.1} parent=35 // pred_region
          %p209 = scmp.lt.s32.totalorder %s15, 1
          %s210 = scalar_select %p209, %s15, 1
          %s211 = smul.addr %s210, 2
          %s212 = smul.addr %s211, 4
          %s213 = scalar_lea.vmem %s0, %s212
        $region40: #{tpu_custom_call.1} parent=35 // pred_fallthru
          _
      $region36: #{tpu_custom_call.1} parent=5 // pred_fallthru
        _
      %p214 = scmp.le.s32.totalorder 1, %s15
      %p215 = scmp.lt.s32.totalorder %s15, 3
      %p216 = pnand %p214, %p215
      %p217 = pneg %p216
      // Predicated region
      $region41: #{tpu_custom_call.1} parent=5 // pred_check
        _
      $region42: #{tpu_custom_call.1} parent=5 // pred_check_branch
        %219 = sbr.rel (%p216) target = $region44
      $region43: #{tpu_custom_call.1} parent=5 // pred_region
        %s220 = ssub.s32 %s15, 1
        %p221 = scmp.lt.s32.totalorder %s20, 1
        %s222 = scalar_select %p221, %s20, 1
        %s223 = smul.addr %s222, 2
        %s224 = smul.addr %s223, 4
        %s225 = scalar_lea.vmem %s0, %s224
        %p226 = pneg %p41
        %p227 = pneg %p38
        %p228 = pneg %p62
        %p229 = pneg %p59
        %p230 = pneg %p83
        %p231 = pneg %p80
        %p232 = pneg %p104
        %p233 = pneg %p101
        %p234 = pneg %p125
        %p235 = pneg %p122
        %p236 = pneg %p146
        %p237 = pneg %p143
        %p238 = pneg %p172
        %p239 = pneg %p169
        %s240 = sand.u32 %s159, 1
        %s241 = scalar_lea.sflag [#allocation4], %s240
        %s242 = sand.u32 %s159, 1
        %s243 = smul.addr %s242, 8
        %s244 = scalar_lea.vmem [#allocation3], %s243
        %p245 = scmp.lt.s32.totalorder %s20, 1
        %s246 = scalar_select %p245, %s20, 1
        %s247 = smul.addr %s246, 2
        %s248 = smul.addr %s247, 4
        %s249 = scalar_lea.vmem %s0, %s248
        %v250 = vld [vmem:[%s249] sm:$0xff]
        %v252 = vrot.slane %v250, 5
        %v253 = vrot.slane %v252, 4
        %v255 = vadd.f32 %v250, %v253
        %v256 = vrot.slane %v250, 6
        %v257 = vrot.slane %v256, 4
        %v259 = vadd.f32 %v255, %v257
        %v260 = vrot.slane %v250, 7
        %v261 = vrot.slane %v260, 4
        %v263 = vadd.f32 %v259, %v261
        %v264 = vmul.f32 %v263, 0.25
        %v266 = vlaneseq
        %v267 = vshrl.u32 %v266, 7
        %v268 = vsub.s32 0, %v267
        %v269 = vrot.slane %v264, %v268
        %v270 = vlaneseq
        %v271 = vshrl.u32 %v270, 7
        %v272 = vsub.s32 4, %v271
        %v273 = vrot.slane %v264, %v272
        %v276 = vlaneseq
        %v277 = vshrl.u32 %v276, 7
        %v278 = vsub.s32 0, %v277
        %v279 = vrot.slane %v269, %v278
        %v280 = vlaneseq
        %v281 = vshrl.u32 %v280, 7
        %v282 = vsub.s32 0, %v281
        %v283 = vrot.slane %v273, %v282
        %v286 = vcombine.low %v279, %v283
        %v288 = vsub.f32 %v250, %v286
        %v289 = vmul.f32 %v288, %v288
        %v291 = vrot.slane %v289, 5
        %v292 = vrot.slane %v291, 4
        %v294 = vadd.f32 %v289, %v292
        %v295 = vrot.slane %v289, 6
        %v296 = vrot.slane %v295, 4
        %v298 = vadd.f32 %v294, %v296
        %v299 = vrot.slane %v289, 7
        %v300 = vrot.slane %v299, 4
        %v302 = vadd.f32 %v298, %v300
        %v303 = vmul.f32 %v302, 0.25
        %v304 = vadd.f32 %v303, 1e-06
        %v305 = vrsqrt.pop %v304
        %v307 = vlaneseq
        %v308 = vshrl.u32 %v307, 7
        %v309 = vsub.s32 0, %v308
        %v310 = vrot.slane %v305, %v309
        %v311 = vlaneseq
        %v312 = vshrl.u32 %v311, 7
        %v313 = vsub.s32 4, %v312
        %v314 = vrot.slane %v305, %v313
        %v317 = vlaneseq
        %v318 = vshrl.u32 %v317, 7
        %v319 = vsub.s32 0, %v318
        %v320 = vrot.slane %v310, %v319
        %v321 = vlaneseq
        %v322 = vshrl.u32 %v321, 7
        %v323 = vsub.s32 0, %v322
        %v324 = vrot.slane %v314, %v323
        %v327 = vcombine.low %v320, %v324
        %v329 = vmul.f32 %v288, %v327
        %v330 = vld [vmem:[%s1] sm:$0xf]
        %332 = vset.pattern.permute.xlu0 0
        %333 = vperm.xlu0 %332, %v330
        %v334 = vpop.permute.xlu0 %333
        %v336 = vunpack.c.l.s4 839922192
        %v337 = vunpack.c.0.s8 %v336
        %v338 = vlaneseq
        %v339 = vshrl.u32 %v338, 7
        %v340 = vsub.s32 %v337, %v339
        %v341 = vrot.slane %v334, %v340
        %v343 = vmul.f32 %v329, %v341
        %v344 = vld [vmem:[%s2] sm:$0xf]
        %346 = vset.pattern.permute.xlu0 0
        %347 = vperm.xlu0 %346, %v344
        %v348 = vpop.permute.xlu0 %347
        %v350 = vunpack.c.l.s4 839922192
        %v351 = vunpack.c.0.s8 %v350
        %v352 = vlaneseq
        %v353 = vshrl.u32 %v352, 7
        %v354 = vsub.s32 %v351, %v353
        %v355 = vrot.slane %v348, %v354
        %v357 = vadd.f32 %v343, %v355
        %v358 = vld [vmem:[%s3] sm:$0xff]
        %v359 = vld [vmem:[%s3 + $0x8] sm:$0xff]
        %361 = vset.pattern.permute.xlu0 0
        %362 = vperm.xlu0 %361, %v358
        %v363 = vpop.permute.xlu0 %362
        %366 = vset.pattern.permute.xlu0 0
        %367 = vperm.xlu0 %366, %v359
        %v368 = vpop.permute.xlu0 %367
        %v371 = vlaneseq
        %v372 = vshrl.u32 %v371, 7
        %v373 = vsub.s32 0, %v372
        %v374 = vrot.slane %v357, %v373
        %v375 = vlaneseq
        %v376 = vshrl.u32 %v375, 7
        %v377 = vsub.s32 4, %v376
        %v378 = vrot.slane %v357, %v377
        %v381 = vlaneseq
        %v382 = vshrl.u32 %v381, 7
        %v383 = vsub.s32 0, %v382
        %v384 = vrot.slane %v374, %v383
        %v385 = vlaneseq
        %v386 = vshrl.u32 %v385, 7
        %v387 = vsub.s32 0, %v386
        %v388 = vrot.slane %v378, %v387
        %v389 = vmul.f32 %v363, %v384
        %v390 = vmul.f32 %v363, %v388
        %v391 = vmul.f32 %v368, %v384
        %v392 = vmul.f32 %v368, %v388
        %393 = vset.pattern.permute.xlu0 1
        %394 = vperm.xlu0 %393, %v358
        %v395 = vpop.permute.xlu0 %394
        %397 = vset.pattern.permute.xlu0 1
        %398 = vperm.xlu0 %397, %v359
        %v399 = vpop.permute.xlu0 %398
        %v401 = vlaneseq
        %v402 = vshrl.u32 %v401, 7
        %v403 = vsub.s32 1, %v402
        %v404 = vrot.slane %v357, %v403
        %v405 = vlaneseq
        %v406 = vshrl.u32 %v405, 7
        %v407 = vsub.s32 5, %v406
        %v408 = vrot.slane %v357, %v407
        %v411 = vlaneseq
        %v412 = vshrl.u32 %v411, 7
        %v413 = vsub.s32 1, %v412
        %v414 = vrot.slane %v404, %v413
        %v415 = vlaneseq
        %v416 = vshrl.u32 %v415, 7
        %v417 = vsub.s32 1, %v416
        %v418 = vrot.slane %v408, %v417
        %v419 = vmul.f32 %v395, %v414
        %v420 = vmul.f32 %v395, %v418
        %v421 = vmul.f32 %v399, %v414
        %v422 = vmul.f32 %v399, %v418
        %v423 = vadd.f32 %v389, %v419
        %v424 = vadd.f32 %v390, %v420
        %v425 = vadd.f32 %v391, %v421
        %v426 = vadd.f32 %v392, %v422
        %427 = vset.pattern.permute.xlu0 2
        %428 = vperm.xlu0 %427, %v358
        %v429 = vpop.permute.xlu0 %428
        %431 = vset.pattern.permute.xlu0 2
        %432 = vperm.xlu0 %431, %v359
        %v433 = vpop.permute.xlu0 %432
        %v435 = vlaneseq
        %v436 = vshrl.u32 %v435, 7
        %v437 = vsub.s32 2, %v436
        %v438 = vrot.slane %v357, %v437
        %v439 = vlaneseq
        %v440 = vshrl.u32 %v439, 7
        %v441 = vsub.s32 6, %v440
        %v442 = vrot.slane %v357, %v441
        %v445 = vlaneseq
        %v446 = vshrl.u32 %v445, 7
        %v447 = vsub.s32 2, %v446
        %v448 = vrot.slane %v438, %v447
        %v449 = vlaneseq
        %v450 = vshrl.u32 %v449, 7
        %v451 = vsub.s32 2, %v450
        %v452 = vrot.slane %v442, %v451
        %v453 = vmul.f32 %v429, %v448
        %v454 = vmul.f32 %v429, %v452
        %v455 = vmul.f32 %v433, %v448
        %v456 = vmul.f32 %v433, %v452
        %v457 = vadd.f32 %v423, %v453
        %v458 = vadd.f32 %v424, %v454
        %v459 = vadd.f32 %v425, %v455
        %v460 = vadd.f32 %v426, %v456
        %461 = vset.pattern.permute.xlu0 3
        %462 = vperm.xlu0 %461, %v358
        %v463 = vpop.permute.xlu0 %462
        %465 = vset.pattern.permute.xlu0 3
        %466 = vperm.xlu0 %465, %v359
        %v467 = vpop.permute.xlu0 %466
        %v469 = vlaneseq
        %v470 = vshrl.u32 %v469, 7
        %v471 = vsub.s32 3, %v470
        %v472 = vrot.slane %v357, %v471
        %v473 = vlaneseq
        %v474 = vshrl.u32 %v473, 7
        %v475 = vsub.s32 7, %v474
        %v476 = vrot.slane %v357, %v475
        %v479 = vlaneseq
        %v480 = vshrl.u32 %v479, 7
        %v481 = vsub.s32 3, %v480
        %v482 = vrot.slane %v472, %v481
        %v483 = vlaneseq
        %v484 = vshrl.u32 %v483, 7
        %v485 = vsub.s32 3, %v484
        %v486 = vrot.slane %v476, %v485
        %v487 = vmul.f32 %v463, %v482
        %v488 = vmul.f32 %v463, %v486
        %v489 = vmul.f32 %v467, %v482
        %v490 = vmul.f32 %v467, %v486
        %v491 = vadd.f32 %v457, %v487
        %v492 = vadd.f32 %v458, %v488
        %v493 = vadd.f32 %v459, %v489
        %v494 = vadd.f32 %v460, %v490
        %v495 = vmul.f32 %v491, 0.70710677
        %v496 = vmul.f32 %v492, 0.70710677
        %v497 = vmul.f32 %v493, 0.70710677
        %v498 = vmul.f32 %v494, 0.70710677
        %v499 = vand.u32 2147483647, %v495
        %v500 = vand.u32 2147483647, %v496
        %v501 = vand.u32 2147483647, %v497
        %v502 = vand.u32 2147483647, %v498
        %v503 = vmul.f32 %v499, 0.3275911
        %v504 = vmul.f32 %v500, 0.3275911
        %v505 = vmul.f32 %v501, 0.3275911
        %v506 = vmul.f32 %v502, 0.3275911
        %v507 = vadd.f32 %v503, 1.0
        %v508 = vadd.f32 %v504, 1.0
        %v509 = vadd.f32 %v505, 1.0
        %v510 = vadd.f32 %v506, 1.0
        %v511 = vrcp.pop %v507
        %v512 = vmul.f32 1.0, %v511
        %v513 = vrcp.pop %v508
        %v514 = vmul.f32 1.0, %v513
        %v515 = vrcp.pop %v509
        %v516 = vmul.f32 1.0, %v515
        %v517 = vrcp.pop %v510
        %v518 = vmul.f32 1.0, %v517
        %v519 = vmul.f32 %v512, 1.0614054
        %v520 = vmul.f32 %v514, 1.0614054
        %v521 = vmul.f32 %v516, 1.0614054
        %v522 = vmul.f32 %v518, 1.0614054
        %v523 = vadd.f32 %v519, -1.4531521
        %v524 = vadd.f32 %v520, -1.4531521
        %v525 = vadd.f32 %v521, -1.4531521
        %v526 = vadd.f32 %v522, -1.4531521
        %v527 = vmul.f32 %v512, %v523
        %v528 = vmul.f32 %v514, %v524
        %v529 = vmul.f32 %v516, %v525
        %v530 = vmul.f32 %v518, %v526
        %v531 = vadd.f32 %v527, 1.4214138
        %v532 = vadd.f32 %v528, 1.4214138
        %v533 = vadd.f32 %v529, 1.4214138
        %v534 = vadd.f32 %v530, 1.4214138
        %v535 = vmul.f32 %v512, %v531
        %v536 = vmul.f32 %v514, %v532
        %v537 = vmul.f32 %v516, %v533
        %v538 = vmul.f32 %v518, %v534
        %v539 = vadd.f32 %v535, -0.28449672
        %v540 = vadd.f32 %v536, -0.28449672
        %v541 = vadd.f32 %v537, -0.28449672
        %v542 = vadd.f32 %v538, -0.28449672
        %v543 = vmul.f32 %v512, %v539
        %v544 = vmul.f32 %v514, %v540
        %v545 = vmul.f32 %v516, %v541
        %v546 = vmul.f32 %v518, %v542
        %v547 = vadd.f32 %v543, 0.2548296
        %v548 = vadd.f32 %v544, 0.2548296
        %v549 = vadd.f32 %v545, 0.2548296
        %v550 = vadd.f32 %v546, 0.2548296
        %v551 = vmul.f32 %v512, %v547
        %v552 = vmul.f32 %v514, %v548
        %v553 = vmul.f32 %v516, %v549
        %v554 = vmul.f32 %v518, %v550
        %v555 = vsub.f32 0.0, %v499
        %v556 = vsub.f32 0.0, %v500
        %v557 = vsub.f32 0.0, %v501
        %v558 = vsub.f32 0.0, %v502
        %v559 = vmul.f32 %v555, %v499
        %v560 = vmul.f32 %v556, %v500
        %v561 = vmul.f32 %v557, %v501
        %v562 = vmul.f32 %v558, %v502
        %v563 = vmul.f32 %v559, 1.442695
        %v564 = vpow.pop %v563
        %v565 = vmul.f32 %v560, 1.442695
        %v566 = vpow.pop %v565
        %v567 = vmul.f32 %v561, 1.442695
        %v568 = vpow.pop %v567
        %v569 = vmul.f32 %v562, 1.442695
        %v570 = vpow.pop %v569
        %v571 = vmul.f32 %v551, %v564
        %v572 = vmul.f32 %v552, %v566
        %v573 = vmul.f32 %v553, %v568
        %v574 = vmul.f32 %v554, %v570
        %v575 = vsub.f32 1.0, %v571
        %v576 = vsub.f32 1.0, %v572
        %v577 = vsub.f32 1.0, %v573
        %v578 = vsub.f32 1.0, %v574
        %vm579 = vcmp.lt.f32.partialorder %v495, 0.0
        %vm580 = vcmp.lt.f32.partialorder %v496, 0.0
        %vm581 = vcmp.lt.f32.partialorder %v497, 0.0
        %vm582 = vcmp.lt.f32.partialorder %v498, 0.0
        %v583 = vsub.f32 0.0, %v575
        %v584 = vsub.f32 0.0, %v576
        %v585 = vsub.f32 0.0, %v577
        %v586 = vsub.f32 0.0, %v578
        %v587 = vsel %vm579, %v583, %v575
        %v588 = vsel %vm580, %v584, %v576
        %v589 = vsel %vm581, %v585, %v577
        %v590 = vsel %vm582, %v586, %v578
        %v591 = vmul.f32 %v491, 0.5
        %v592 = vmul.f32 %v492, 0.5
        %v593 = vmul.f32 %v493, 0.5
        %v594 = vmul.f32 %v494, 0.5
        %v595 = vadd.f32 %v587, 1.0
        %v596 = vadd.f32 %v588, 1.0
        %v597 = vadd.f32 %v589, 1.0
        %v598 = vadd.f32 %v590, 1.0
        %v599 = vmul.f32 %v591, %v595
        %v600 = vmul.f32 %v592, %v596
        %v601 = vmul.f32 %v593, %v597
        %v602 = vmul.f32 %v594, %v598
        %603 = vst [vmem:[#allocation2] sm:$0xff] 0.0
        %604 = vst [vmem:[#allocation2 + $0x20] sm:$0xff] 0.0
        %605 = vst [vmem:[#allocation2 + $0x18] sm:$0xff] 0.0
        %606 = vst [vmem:[#allocation2 + $0x38] sm:$0xff] 0.0
        %607 = vst [vmem:[#allocation2 + $0x8] sm:$0xff] %v599
        %608 = vst [vmem:[#allocation2 + $0x10] sm:$0xff] %v600
        %609 = vst [vmem:[#allocation2 + $0x28] sm:$0xff] %v601
        %610 = vst [vmem:[#allocation2 + $0x30] sm:$0xff] %v602
        %v611 = vlaneseq
        %v612 = vand.u32 %v611, 127
        %v613 = vadd.s32 %v612, 128
        %vm614 = vcmp.lt.s32.totalorder %v612, 0
        %v615 = vsub.s32 0, %v612
        %v616 = vsel %vm614, %v615, %v612
        %v617 = vshrl.u32 %v616, 4
        %v618 = vand.u32 %v616, 15
        %v619 = vsub.s32 0, %v618
        %v620 = vsel %vm614, %v619, %v618
        %vm621 = vcmp.lt.s32.totalorder %v613, 0
        %v622 = vsub.s32 0, %v613
        %v623 = vsel %vm621, %v622, %v613
        %v624 = vshrl.u32 %v623, 4
        %v625 = vand.u32 %v623, 15
        %v626 = vsub.s32 0, %v625
        %v627 = vsel %vm621, %v626, %v625
        %vm628 = vcmp.ne.s32.totalorder %v620, 0
        %vm629 = vcmp.ne.s32.totalorder %v627, 0
        %vm630 = vcmp.lt.s32.totalorder %v620, 0
        %vm631 = vcmp.lt.s32.totalorder %v627, 0
        %vm632 = vmand %vm630, %vm628
        %vm633 = vmand %vm631, %vm629
        %v634 = vadd.s32 %v620, 16
        %v635 = vadd.s32 %v627, 16
        %v636 = vsel %vm632, %v634, %v620
        %v637 = vsel %vm633, %v635, %v627
        %vm638 = vcmp.ge.s32.totalorder %v636, 1
        %vm639 = vcmp.ge.s32.totalorder %v637, 1
        %v640 = vsel %vm638, 1, 0
        %v641 = vsel %vm639, 1, 0
        %v642 = vcvt.s32.f32 %v640
        %v643 = vcvt.s32.f32 %v641
        %vm644 = vcmp.le.s32.totalorder %v636, 14
        %vm645 = vcmp.le.s32.totalorder %v637, 14
        %v646 = vsel %vm644, 1, 0
        %v647 = vsel %vm645, 1, 0
        %v648 = vcvt.s32.f32 %v646
        %v649 = vcvt.s32.f32 %v647
        %v650 = vld [vmem:[%s4] sm:$0xff]
        %v651 = vld [vmem:[%s4 + $0x8] sm:$0xff]
        %v652 = vld [vmem:[#allocation2] sm:$0xff]
        %v653 = vld [vmem:[#allocation2 + $0x8] sm:$0xff]
        %v654 = vld [vmem:[#allocation2 + $0x10] sm:$0xff]
        %v655 = vld [vmem:[#allocation2 + $0x20] sm:$0xff]
        %v656 = vld [vmem:[#allocation2 + $0x28] sm:$0xff]
        %v657 = vld [vmem:[#allocation2 + $0x30] sm:$0xff]
        %660 = vrot.lane.b32.xlu0 %v642, 111
        %v661 = vpop.permute.xlu0 %660
        %662 = vrot.lane.b32.xlu0 %v643, 111
        %v663 = vpop.permute.xlu0 %662
        %vm664 = vcmask 908288
        %v665 = vsel %vm664, %v661, %v663
        %v669 = vmul.f32 %v652, %v661
        %v670 = vmul.f32 %v653, %v665
        %v671 = vmul.f32 %v654, %v663
        %v672 = vmul.f32 %v655, %v661
        %v673 = vmul.f32 %v656, %v665
        %v674 = vmul.f32 %v657, %v663
        %676 = vset.pattern.permute.xlu0 0
        %677 = vperm.xlu0 %676, %v650
        %v678 = vpop.permute.xlu0 %677
        %681 = vset.pattern.permute.xlu0 0
        %682 = vperm.xlu0 %681, %v651
        %v683 = vpop.permute.xlu0 %682
        %v685 = vmul.f32 %v678, %v669
        %v686 = vmul.f32 %v678, %v670
        %v687 = vmul.f32 %v678, %v671
        %v688 = vmul.f32 %v683, %v672
        %v689 = vmul.f32 %v683, %v673
        %v690 = vmul.f32 %v683, %v674
        %v691 = vadd.f32 %v685, 0.0
        %v692 = vadd.f32 %v686, 0.0
        %v693 = vadd.f32 %v687, 0.0
        %v694 = vadd.f32 %v688, 0.0
        %v695 = vadd.f32 %v689, 0.0
        %v696 = vadd.f32 %v690, 0.0
        %697 = vset.pattern.permute.xlu0 1
        %698 = vperm.xlu0 %697, %v650
        %v699 = vpop.permute.xlu0 %698
        %701 = vset.pattern.permute.xlu0 1
        %702 = vperm.xlu0 %701, %v651
        %v703 = vpop.permute.xlu0 %702
        %v705 = vmul.f32 %v699, %v652
        %v706 = vmul.f32 %v699, %v653
        %v707 = vmul.f32 %v699, %v654
        %v708 = vmul.f32 %v703, %v655
        %v709 = vmul.f32 %v703, %v656
        %v710 = vmul.f32 %v703, %v657
        %717 = vrot.lane.b32.xlu0 %v705, 127
        %v718 = vpop.permute.xlu0 %717
        %719 = vrot.lane.b32.xlu0 %v706, 127
        %v720 = vpop.permute.xlu0 %719
        %721 = vrot.lane.b32.xlu0 %v707, 127
        %v722 = vpop.permute.xlu0 %721
        %723 = vrot.lane.b32.xlu0 %v708, 127
        %v724 = vpop.permute.xlu0 %723
        %725 = vrot.lane.b32.xlu0 %v709, 127
        %v726 = vpop.permute.xlu0 %725
        %727 = vrot.lane.b32.xlu0 %v710, 127
        %v728 = vpop.permute.xlu0 %727
        %vm729 = vcmask 1039360
        %v730 = vsel %vm729, %v718, %v720
        %v731 = vsel %vm729, %v720, %v722
        %v732 = vsel %vm729, %v724, %v726
        %v733 = vsel %vm729, %v726, %v728
        %v740 = vadd.f32 %v691, %v730
        %v741 = vadd.f32 %v692, %v731
        %v742 = vadd.f32 %v693, %v722
        %v743 = vadd.f32 %v694, %v732
        %v744 = vadd.f32 %v695, %v733
        %v745 = vadd.f32 %v696, %v728
        %748 = vrot.lane.b32.xlu0 %v648, 113
        %v749 = vpop.permute.xlu0 %748
        %750 = vrot.lane.b32.xlu0 %v649, 113
        %v751 = vpop.permute.xlu0 %750
        %vm752 = vcmask 924672
        %v753 = vsel %vm752, %v749, %v751
        %v757 = vmul.f32 %v652, %v749
        %v758 = vmul.f32 %v653, %v753
        %v759 = vmul.f32 %v654, %v751
        %v760 = vmul.f32 %v655, %v749
        %v761 = vmul.f32 %v656, %v753
        %v762 = vmul.f32 %v657, %v751
        %763 = vset.pattern.permute.xlu0 2
        %764 = vperm.xlu0 %763, %v650
        %v765 = vpop.permute.xlu0 %764
        %767 = vset.pattern.permute.xlu0 2
        %768 = vperm.xlu0 %767, %v651
        %v769 = vpop.permute.xlu0 %768
        %v771 = vmul.f32 %v765, %v757
        %v772 = vmul.f32 %v765, %v758
        %v773 = vmul.f32 %v765, %v759
        %v774 = vmul.f32 %v769, %v760
        %v775 = vmul.f32 %v769, %v761
        %v776 = vmul.f32 %v769, %v762
        %783 = vrot.lane.b32.xlu0 %v771, 126
        %v784 = vpop.permute.xlu0 %783
        %785 = vrot.lane.b32.xlu0 %v772, 126
        %v786 = vpop.permute.xlu0 %785
        %787 = vrot.lane.b32.xlu0 %v773, 126
        %v788 = vpop.permute.xlu0 %787
        %789 = vrot.lane.b32.xlu0 %v774, 126
        %v790 = vpop.permute.xlu0 %789
        %791 = vrot.lane.b32.xlu0 %v775, 126
        %v792 = vpop.permute.xlu0 %791
        %793 = vrot.lane.b32.xlu0 %v776, 126
        %v794 = vpop.permute.xlu0 %793
        %vm795 = vcmask 1031168
        %v796 = vsel %vm795, %v784, %v786
        %v797 = vsel %vm795, %v786, %v788
        %v798 = vsel %vm795, %v790, %v792
        %v799 = vsel %vm795, %v792, %v794
        %v806 = vadd.f32 %v740, %v796
        %v807 = vadd.f32 %v741, %v797
        %v808 = vadd.f32 %v742, %v788
        %v809 = vadd.f32 %v743, %v798
        %v810 = vadd.f32 %v744, %v799
        %v811 = vadd.f32 %v745, %v794
        %812 = vrot.lane.b32.xlu0 %v642, 127
        %v813 = vpop.permute.xlu0 %812
        %814 = vrot.lane.b32.xlu0 %v643, 127
        %v815 = vpop.permute.xlu0 %814
        %v816 = vsel %vm729, %v813, %v815
        %v820 = vmul.f32 %v652, %v813
        %v821 = vmul.f32 %v653, %v816
        %v822 = vmul.f32 %v654, %v815
        %v823 = vmul.f32 %v655, %v813
        %v824 = vmul.f32 %v656, %v816
        %v825 = vmul.f32 %v657, %v815
        %826 = vset.pattern.permute.xlu0 3
        %827 = vperm.xlu0 %826, %v650
        %v828 = vpop.permute.xlu0 %827
        %830 = vset.pattern.permute.xlu0 3
        %831 = vperm.xlu0 %830, %v651
        %v832 = vpop.permute.xlu0 %831
        %v834 = vmul.f32 %v828, %v820
        %v835 = vmul.f32 %v828, %v821
        %v836 = vmul.f32 %v828, %v822
        %v837 = vmul.f32 %v832, %v823
        %v838 = vmul.f32 %v832, %v824
        %v839 = vmul.f32 %v832, %v825
        %846 = vrot.lane.b32.xlu0 %v834, 112
        %v847 = vpop.permute.xlu0 %846
        %848 = vrot.lane.b32.xlu0 %v835, 112
        %v849 = vpop.permute.xlu0 %848
        %850 = vrot.lane.b32.xlu0 %v836, 112
        %v851 = vpop.permute.xlu0 %850
        %852 = vrot.lane.b32.xlu0 %v837, 112
        %v853 = vpop.permute.xlu0 %852
        %854 = vrot.lane.b32.xlu0 %v838, 112
        %v855 = vpop.permute.xlu0 %854
        %856 = vrot.lane.b32.xlu0 %v839, 112
        %v857 = vpop.permute.xlu0 %856
        %vm858 = vcmask 916480
        %v859 = vsel %vm858, %v847, %v849
        %v860 = vsel %vm858, %v849, %v851
        %v861 = vsel %vm858, %v853, %v855
        %v862 = vsel %vm858, %v855, %v857
        %v869 = vadd.f32 %v806, %v859
        %v870 = vadd.f32 %v807, %v860
        %v871 = vadd.f32 %v808, %v851
        %v872 = vadd.f32 %v809, %v861
        %v873 = vadd.f32 %v810, %v862
        %v874 = vadd.f32 %v811, %v857
        %875 = vset.pattern.permute.xlu0 4
        %876 = vperm.xlu0 %875, %v650
        %v877 = vpop.permute.xlu0 %876
        %879 = vset.pattern.permute.xlu0 4
        %880 = vperm.xlu0 %879, %v651
        %v881 = vpop.permute.xlu0 %880
        %v883 = vmul.f32 %v877, %v653
        %v884 = vmul.f32 %v877, %v654
        %v885 = vmul.f32 %v881, %v656
        %v886 = vmul.f32 %v881, %v657
        %891 = vrot.lane.b32.xlu0 %v883, 111
        %v892 = vpop.permute.xlu0 %891
        %893 = vrot.lane.b32.xlu0 %v884, 111
        %v894 = vpop.permute.xlu0 %893
        %895 = vrot.lane.b32.xlu0 %v885, 111
        %v896 = vpop.permute.xlu0 %895
        %897 = vrot.lane.b32.xlu0 %v886, 111
        %v898 = vpop.permute.xlu0 %897
        %v899 = vsel %vm664, %v892, %v894
        %v900 = vsel %vm664, %v896, %v898
        %v907 = vadd.f32 %v869, %v892
        %v908 = vadd.f32 %v870, %v899
        %v909 = vadd.f32 %v871, %v894
        %v910 = vadd.f32 %v872, %v896
        %v911 = vadd.f32 %v873, %v900
        %v912 = vadd.f32 %v874, %v898
        %v913 = vld [vmem:[#allocation2 + $0x8] sm:$0xff]
        %v914 = vld [vmem:[#allocation2 + $0x10] sm:$0xff]
        %v915 = vld [vmem:[#allocation2 + $0x18] sm:$0xff]
        %v916 = vld [vmem:[#allocation2 + $0x28] sm:$0xff]
        %v917 = vld [vmem:[#allocation2 + $0x30] sm:$0xff]
        %v918 = vld [vmem:[#allocation2 + $0x38] sm:$0xff]
        %919 = vrot.lane.b32.xlu0 %v648, 1
        %v920 = vpop.permute.xlu0 %919
        %921 = vrot.lane.b32.xlu0 %v649, 1
        %v922 = vpop.permute.xlu0 %921
        %vm923 = vcmask 7168
        %v924 = vsel %vm923, %v920, %v922
        %v928 = vmul.f32 %v913, %v920
        %v929 = vmul.f32 %v914, %v924
        %v930 = vmul.f32 %v915, %v922
        %v931 = vmul.f32 %v916, %v920
        %v932 = vmul.f32 %v917, %v924
        %v933 = vmul.f32 %v918, %v922
        %934 = vset.pattern.permute.xlu0 5
        %935 = vperm.xlu0 %934, %v650
        %v936 = vpop.permute.xlu0 %935
        %938 = vset.pattern.permute.xlu0 5
        %939 = vperm.xlu0 %938, %v651
        %v940 = vpop.permute.xlu0 %939
        %v942 = vmul.f32 %v936, %v928
        %v943 = vmul.f32 %v936, %v929
        %v944 = vmul.f32 %v936, %v930
        %v945 = vmul.f32 %v940, %v931
        %v946 = vmul.f32 %v940, %v932
        %v947 = vmul.f32 %v940, %v933
        %954 = vrot.lane.b32.xlu0 %v942, 110
        %v955 = vpop.permute.xlu0 %954
        %956 = vrot.lane.b32.xlu0 %v943, 110
        %v957 = vpop.permute.xlu0 %956
        %958 = vrot.lane.b32.xlu0 %v944, 110
        %v959 = vpop.permute.xlu0 %958
        %960 = vrot.lane.b32.xlu0 %v945, 110
        %v961 = vpop.permute.xlu0 %960
        %962 = vrot.lane.b32.xlu0 %v946, 110
        %v963 = vpop.permute.xlu0 %962
        %964 = vrot.lane.b32.xlu0 %v947, 110
        %v965 = vpop.permute.xlu0 %964
        %vm966 = vcmask 900096
        %v967 = vsel %vm966, %v955, %v957
        %v968 = vsel %vm966, %v957, %v959
        %v969 = vsel %vm966, %v961, %v963
        %v970 = vsel %vm966, %v963, %v965
        %v977 = vadd.f32 %v907, %v955
        %v978 = vadd.f32 %v908, %v967
        %v979 = vadd.f32 %v909, %v968
        %v980 = vadd.f32 %v910, %v961
        %v981 = vadd.f32 %v911, %v969
        %v982 = vadd.f32 %v912, %v970
        %983 = vrot.lane.b32.xlu0 %v642, 15
        %v984 = vpop.permute.xlu0 %983
        %985 = vrot.lane.b32.xlu0 %v643, 15
        %v986 = vpop.permute.xlu0 %985
        %vm987 = vcmask 121856
        %v988 = vsel %vm987, %v984, %v986
        %v992 = vmul.f32 %v913, %v984
        %v993 = vmul.f32 %v914, %v988
        %v994 = vmul.f32 %v915, %v986
        %v995 = vmul.f32 %v916, %v984
        %v996 = vmul.f32 %v917, %v988
        %v997 = vmul.f32 %v918, %v986
        %998 = vset.pattern.permute.xlu0 6
        %999 = vperm.xlu0 %998, %v650
        %v1000 = vpop.permute.xlu0 %999
        %1002 = vset.pattern.permute.xlu0 6
        %1003 = vperm.xlu0 %1002, %v651
        %v1004 = vpop.permute.xlu0 %1003
        %v1006 = vmul.f32 %v1000, %v992
        %v1007 = vmul.f32 %v1000, %v993
        %v1008 = vmul.f32 %v1000, %v994
        %v1009 = vmul.f32 %v1004, %v995
        %v1010 = vmul.f32 %v1004, %v996
        %v1011 = vmul.f32 %v1004, %v997
        %1018 = vrot.lane.b32.xlu0 %v1006, 96
        %v1019 = vpop.permute.xlu0 %1018
        %1020 = vrot.lane.b32.xlu0 %v1007, 96
        %v1021 = vpop.permute.xlu0 %1020
        %1022 = vrot.lane.b32.xlu0 %v1008, 96
        %v1023 = vpop.permute.xlu0 %1022
        %1024 = vrot.lane.b32.xlu0 %v1009, 96
        %v1025 = vpop.permute.xlu0 %1024
        %1026 = vrot.lane.b32.xlu0 %v1010, 96
        %v1027 = vpop.permute.xlu0 %1026
        %1028 = vrot.lane.b32.xlu0 %v1011, 96
        %v1029 = vpop.permute.xlu0 %1028
        %vm1030 = vcmask 785408
        %v1031 = vsel %vm1030, %v1019, %v1021
        %v1032 = vsel %vm1030, %v1021, %v1023
        %v1033 = vsel %vm1030, %v1025, %v1027
        %v1034 = vsel %vm1030, %v1027, %v1029
        %v1041 = vadd.f32 %v977, %v1019
        %v1042 = vadd.f32 %v978, %v1031
        %v1043 = vadd.f32 %v979, %v1032
        %v1044 = vadd.f32 %v980, %v1025
        %v1045 = vadd.f32 %v981, %v1033
        %v1046 = vadd.f32 %v982, %v1034
        %1047 = vset.pattern.permute.xlu0 7
        %1048 = vperm.xlu0 %1047, %v650
        %v1049 = vpop.permute.xlu0 %1048
        %1051 = vset.pattern.permute.xlu0 7
        %1052 = vperm.xlu0 %1051, %v651
        %v1053 = vpop.permute.xlu0 %1052
        %v1055 = vmul.f32 %v1049, %v913
        %v1056 = vmul.f32 %v1049, %v914
        %v1057 = vmul.f32 %v1049, %v915
        %v1058 = vmul.f32 %v1053, %v916
        %v1059 = vmul.f32 %v1053, %v917
        %v1060 = vmul.f32 %v1053, %v918
        %1067 = vrot.lane.b32.xlu0 %v1055, 95
        %v1068 = vpop.permute.xlu0 %1067
        %1069 = vrot.lane.b32.xlu0 %v1056, 95
        %v1070 = vpop.permute.xlu0 %1069
        %1071 = vrot.lane.b32.xlu0 %v1057, 95
        %v1072 = vpop.permute.xlu0 %1071
        %1073 = vrot.lane.b32.xlu0 %v1058, 95
        %v1074 = vpop.permute.xlu0 %1073
        %1075 = vrot.lane.b32.xlu0 %v1059, 95
        %v1076 = vpop.permute.xlu0 %1075
        %1077 = vrot.lane.b32.xlu0 %v1060, 95
        %v1078 = vpop.permute.xlu0 %1077
        %vm1079 = vcmask 777216
        %v1080 = vsel %vm1079, %v1068, %v1070
        %v1081 = vsel %vm1079, %v1070, %v1072
        %v1082 = vsel %vm1079, %v1074, %v1076
        %v1083 = vsel %vm1079, %v1076, %v1078
        %v1090 = vadd.f32 %v1041, %v1068
        %v1091 = vadd.f32 %v1042, %v1080
        %v1092 = vadd.f32 %v1043, %v1081
        %v1093 = vadd.f32 %v1044, %v1074
        %v1094 = vadd.f32 %v1045, %v1082
        %v1095 = vadd.f32 %v1046, %v1083
        %1096 = vrot.lane.b32.xlu0 %v648, 17
        %v1097 = vpop.permute.xlu0 %1096
        %1098 = vrot.lane.b32.xlu0 %v649, 17
        %v1099 = vpop.permute.xlu0 %1098
        %vm1100 = vcmask 138240
        %v1101 = vsel %vm1100, %v1097, %v1099
        %v1105 = vmul.f32 %v913, %v1097
        %v1106 = vmul.f32 %v914, %v1101
        %v1107 = vmul.f32 %v915, %v1099
        %v1108 = vmul.f32 %v916, %v1097
        %v1109 = vmul.f32 %v917, %v1101
        %v1110 = vmul.f32 %v918, %v1099
        %1111 = vset.pattern.permute.xlu0 8
        %1112 = vperm.xlu0 %1111, %v650
        %v1113 = vpop.permute.xlu0 %1112
        %1115 = vset.pattern.permute.xlu0 8
        %1116 = vperm.xlu0 %1115, %v651
        %v1117 = vpop.permute.xlu0 %1116
        %v1119 = vmul.f32 %v1113, %v1105
        %v1120 = vmul.f32 %v1113, %v1106
        %v1121 = vmul.f32 %v1113, %v1107
        %v1122 = vmul.f32 %v1117, %v1108
        %v1123 = vmul.f32 %v1117, %v1109
        %v1124 = vmul.f32 %v1117, %v1110
        %1131 = vrot.lane.b32.xlu0 %v1119, 94
        %v1132 = vpop.permute.xlu0 %1131
        %1133 = vrot.lane.b32.xlu0 %v1120, 94
        %v1134 = vpop.permute.xlu0 %1133
        %1135 = vrot.lane.b32.xlu0 %v1121, 94
        %v1136 = vpop.permute.xlu0 %1135
        %1137 = vrot.lane.b32.xlu0 %v1122, 94
        %v1138 = vpop.permute.xlu0 %1137
        %1139 = vrot.lane.b32.xlu0 %v1123, 94
        %v1140 = vpop.permute.xlu0 %1139
        %1141 = vrot.lane.b32.xlu0 %v1124, 94
        %v1142 = vpop.permute.xlu0 %1141
        %vm1143 = vcmask 769024
        %v1144 = vsel %vm1143, %v1132, %v1134
        %v1145 = vsel %vm1143, %v1134, %v1136
        %v1146 = vsel %vm1143, %v1138, %v1140
        %v1147 = vsel %vm1143, %v1140, %v1142
        %v1154 = vadd.f32 %v1090, %v1132
        %v1155 = vadd.f32 %v1091, %v1144
        %v1156 = vadd.f32 %v1092, %v1145
        %v1157 = vadd.f32 %v1093, %v1138
        %v1158 = vadd.f32 %v1094, %v1146
        %v1159 = vadd.f32 %v1095, %v1147
        %v1160 = vmul.f32 %v1154, 0.70710677
        %v1161 = vmul.f32 %v1155, 0.70710677
        %v1162 = vmul.f32 %v1156, 0.70710677
        %v1163 = vmul.f32 %v1157, 0.70710677
        %v1164 = vmul.f32 %v1158, 0.70710677
        %v1165 = vmul.f32 %v1159, 0.70710677
        %v1166 = vand.u32 2147483647, %v1160
        %v1167 = vand.u32 2147483647, %v1161
        %v1168 = vand.u32 2147483647, %v1162
        %v1169 = vand.u32 2147483647, %v1163
        %v1170 = vand.u32 2147483647, %v1164
        %v1171 = vand.u32 2147483647, %v1165
        %v1172 = vmul.f32 %v1166, 0.3275911
        %v1173 = vmul.f32 %v1167, 0.3275911
        %v1174 = vmul.f32 %v1168, 0.3275911
        %v1175 = vmul.f32 %v1169, 0.3275911
        %v1176 = vmul.f32 %v1170, 0.3275911
        %v1177 = vmul.f32 %v1171, 0.3275911
        %v1178 = vadd.f32 %v1172, 1.0
        %v1179 = vadd.f32 %v1173, 1.0
        %v1180 = vadd.f32 %v1174, 1.0
        %v1181 = vadd.f32 %v1175, 1.0
        %v1182 = vadd.f32 %v1176, 1.0
        %v1183 = vadd.f32 %v1177, 1.0
        %v1184 = vrcp.pop %v1178
        %v1185 = vmul.f32 1.0, %v1184
        %v1186 = vrcp.pop %v1179
        %v1187 = vmul.f32 1.0, %v1186
        %v1188 = vrcp.pop %v1180
        %v1189 = vmul.f32 1.0, %v1188
        %v1190 = vrcp.pop %v1181
        %v1191 = vmul.f32 1.0, %v1190
        %v1192 = vrcp.pop %v1182
        %v1193 = vmul.f32 1.0, %v1192
        %v1194 = vrcp.pop %v1183
        %v1195 = vmul.f32 1.0, %v1194
        %v1196 = vmul.f32 %v1185, 1.0614054
        %v1197 = vmul.f32 %v1187, 1.0614054
        %v1198 = vmul.f32 %v1189, 1.0614054
        %v1199 = vmul.f32 %v1191, 1.0614054
        %v1200 = vmul.f32 %v1193, 1.0614054
        %v1201 = vmul.f32 %v1195, 1.0614054
        %v1202 = vadd.f32 %v1196, -1.4531521
        %v1203 = vadd.f32 %v1197, -1.4531521
        %v1204 = vadd.f32 %v1198, -1.4531521
        %v1205 = vadd.f32 %v1199, -1.4531521
        %v1206 = vadd.f32 %v1200, -1.4531521
        %v1207 = vadd.f32 %v1201, -1.4531521
        %v1208 = vmul.f32 %v1185, %v1202
        %v1209 = vmul.f32 %v1187, %v1203
        %v1210 = vmul.f32 %v1189, %v1204
        %v1211 = vmul.f32 %v1191, %v1205
        %v1212 = vmul.f32 %v1193, %v1206
        %v1213 = vmul.f32 %v1195, %v1207
        %v1214 = vadd.f32 %v1208, 1.4214138
        %v1215 = vadd.f32 %v1209, 1.4214138
        %v1216 = vadd.f32 %v1210, 1.4214138
        %v1217 = vadd.f32 %v1211, 1.4214138
        %v1218 = vadd.f32 %v1212, 1.4214138
        %v1219 = vadd.f32 %v1213, 1.4214138
        %v1220 = vmul.f32 %v1185, %v1214
        %v1221 = vmul.f32 %v1187, %v1215
        %v1222 = vmul.f32 %v1189, %v1216
        %v1223 = vmul.f32 %v1191, %v1217
        %v1224 = vmul.f32 %v1193, %v1218
        %v1225 = vmul.f32 %v1195, %v1219
        %v1226 = vadd.f32 %v1220, -0.28449672
        %v1227 = vadd.f32 %v1221, -0.28449672
        %v1228 = vadd.f32 %v1222, -0.28449672
        %v1229 = vadd.f32 %v1223, -0.28449672
        %v1230 = vadd.f32 %v1224, -0.28449672
        %v1231 = vadd.f32 %v1225, -0.28449672
        %v1232 = vmul.f32 %v1185, %v1226
        %v1233 = vmul.f32 %v1187, %v1227
        %v1234 = vmul.f32 %v1189, %v1228
        %v1235 = vmul.f32 %v1191, %v1229
        %v1236 = vmul.f32 %v1193, %v1230
        %v1237 = vmul.f32 %v1195, %v1231
        %v1238 = vadd.f32 %v1232, 0.2548296
        %v1239 = vadd.f32 %v1233, 0.2548296
        %v1240 = vadd.f32 %v1234, 0.2548296
        %v1241 = vadd.f32 %v1235, 0.2548296
        %v1242 = vadd.f32 %v1236, 0.2548296
        %v1243 = vadd.f32 %v1237, 0.2548296
        %v1244 = vmul.f32 %v1185, %v1238
        %v1245 = vmul.f32 %v1187, %v1239
        %v1246 = vmul.f32 %v1189, %v1240
        %v1247 = vmul.f32 %v1191, %v1241
        %v1248 = vmul.f32 %v1193, %v1242
        %v1249 = vmul.f32 %v1195, %v1243
        %v1250 = vsub.f32 0.0, %v1166
        %v1251 = vsub.f32 0.0, %v1167
        %v1252 = vsub.f32 0.0, %v1168
        %v1253 = vsub.f32 0.0, %v1169
        %v1254 = vsub.f32 0.0, %v1170
        %v1255 = vsub.f32 0.0, %v1171
        %v1256 = vmul.f32 %v1250, %v1166
        %v1257 = vmul.f32 %v1251, %v1167
        %v1258 = vmul.f32 %v1252, %v1168
        %v1259 = vmul.f32 %v1253, %v1169
        %v1260 = vmul.f32 %v1254, %v1170
        %v1261 = vmul.f32 %v1255, %v1171
        %v1262 = vmul.f32 %v1256, 1.442695
        %v1263 = vpow.pop %v1262
        %v1264 = vmul.f32 %v1257, 1.442695
        %v1265 = vpow.pop %v1264
        %v1266 = vmul.f32 %v1258, 1.442695
        %v1267 = vpow.pop %v1266
        %v1268 = vmul.f32 %v1259, 1.442695
        %v1269 = vpow.pop %v1268
        %v1270 = vmul.f32 %v1260, 1.442695
        %v1271 = vpow.pop %v1270
        %v1272 = vmul.f32 %v1261, 1.442695
        %v1273 = vpow.pop %v1272
        %v1274 = vmul.f32 %v1244, %v1263
        %v1275 = vmul.f32 %v1245, %v1265
        %v1276 = vmul.f32 %v1246, %v1267
        %v1277 = vmul.f32 %v1247, %v1269
        %v1278 = vmul.f32 %v1248, %v1271
        %v1279 = vmul.f32 %v1249, %v1273
        %v1280 = vsub.f32 1.0, %v1274
        %v1281 = vsub.f32 1.0, %v1275
        %v1282 = vsub.f32 1.0, %v1276
        %v1283 = vsub.f32 1.0, %v1277
        %v1284 = vsub.f32 1.0, %v1278
        %v1285 = vsub.f32 1.0, %v1279
        %vm1286 = vcmp.lt.f32.partialorder %v1160, 0.0
        %vm1287 = vcmp.lt.f32.partialorder %v1161, 0.0
        %vm1288 = vcmp.lt.f32.partialorder %v1162, 0.0
        %vm1289 = vcmp.lt.f32.partialorder %v1163, 0.0
        %vm1290 = vcmp.lt.f32.partialorder %v1164, 0.0
        %vm1291 = vcmp.lt.f32.partialorder %v1165, 0.0
        %v1292 = vsub.f32 0.0, %v1280
        %v1293 = vsub.f32 0.0, %v1281
        %v1294 = vsub.f32 0.0, %v1282
        %v1295 = vsub.f32 0.0, %v1283
        %v1296 = vsub.f32 0.0, %v1284
        %v1297 = vsub.f32 0.0, %v1285
        %v1298 = vsel %vm1286, %v1292, %v1280
        %v1299 = vsel %vm1287, %v1293, %v1281
        %v1300 = vsel %vm1288, %v1294, %v1282
        %v1301 = vsel %vm1289, %v1295, %v1283
        %v1302 = vsel %vm1290, %v1296, %v1284
        %v1303 = vsel %vm1291, %v1297, %v1285
        %v1304 = vmul.f32 %v1154, 0.5
        %v1305 = vmul.f32 %v1155, 0.5
        %v1306 = vmul.f32 %v1156, 0.5
        %v1307 = vmul.f32 %v1157, 0.5
        %v1308 = vmul.f32 %v1158, 0.5
        %v1309 = vmul.f32 %v1159, 0.5
        %v1310 = vadd.f32 %v1298, 1.0
        %v1311 = vadd.f32 %v1299, 1.0
        %v1312 = vadd.f32 %v1300, 1.0
        %v1313 = vadd.f32 %v1301, 1.0
        %v1314 = vadd.f32 %v1302, 1.0
        %v1315 = vadd.f32 %v1303, 1.0
        %v1316 = vmul.f32 %v1304, %v1310
        %v1317 = vmul.f32 %v1305, %v1311
        %v1318 = vmul.f32 %v1306, %v1312
        %v1319 = vmul.f32 %v1307, %v1313
        %v1320 = vmul.f32 %v1308, %v1314
        %v1321 = vmul.f32 %v1309, %v1315
        %1326 = vrot.lane.b32.xlu0 %v599, 111
        %v1327 = vpop.permute.xlu0 %1326
        %1328 = vrot.lane.b32.xlu0 %v600, 111
        %v1329 = vpop.permute.xlu0 %1328
        %1330 = vrot.lane.b32.xlu0 %v601, 111
        %v1331 = vpop.permute.xlu0 %1330
        %1332 = vrot.lane.b32.xlu0 %v602, 111
        %v1333 = vpop.permute.xlu0 %1332
        %v1334 = vsel %vm664, %v1327, %v1329
        %v1335 = vsel %vm664, %v1331, %v1333
        %v1342 = vadd.f32 %v1316, %v1327
        %v1343 = vadd.f32 %v1317, %v1334
        %v1344 = vadd.f32 %v1318, %v1329
        %v1345 = vadd.f32 %v1319, %v1331
        %v1346 = vadd.f32 %v1320, %v1335
        %v1347 = vadd.f32 %v1321, %v1333
        %v1348 = vld [vmem:[%s5] sm:$0xf]
        %1350 = vset.pattern.permute.xlu0 0
        %1351 = vperm.xlu0 %1350, %v1348
        %v1352 = vpop.permute.xlu0 %1351
        %v1354 = vlaneseq
        %v1355 = vshrl.u32 %v1354, 7
        %v1356 = vsub.s32 0, %v1355
        %v1357 = vrot.slane %v1342, %v1356
        %v1358 = vlaneseq
        %v1359 = vshrl.u32 %v1358, 7
        %v1360 = vsub.s32 0, %v1359
        %v1361 = vrot.slane %v1343, %v1360
        %v1362 = vlaneseq
        %v1363 = vshrl.u32 %v1362, 7
        %v1364 = vsub.s32 0, %v1363
        %v1365 = vrot.slane %v1344, %v1364
        %v1366 = vmul.f32 %v1352, %v1357
        %v1367 = vmul.f32 %v1352, %v1361
        %v1368 = vmul.f32 %v1352, %v1365
        %1369 = vset.pattern.permute.xlu0 1
        %1370 = vperm.xlu0 %1369, %v1348
        %v1371 = vpop.permute.xlu0 %1370
        %v1373 = vlaneseq
        %v1374 = vshrl.u32 %v1373, 7
        %v1375 = vsub.s32 1, %v1374
        %v1376 = vrot.slane %v1342, %v1375
        %v1377 = vlaneseq
        %v1378 = vshrl.u32 %v1377, 7
        %v1379 = vsub.s32 1, %v1378
        %v1380 = vrot.slane %v1343, %v1379
        %v1381 = vlaneseq
        %v1382 = vshrl.u32 %v1381, 7
        %v1383 = vsub.s32 1, %v1382
        %v1384 = vrot.slane %v1344, %v1383
        %v1385 = vmul.f32 %v1371, %v1376
        %v1386 = vmul.f32 %v1371, %v1380
        %v1387 = vmul.f32 %v1371, %v1384
        %v1388 = vadd.f32 %v1366, %v1385
        %v1389 = vadd.f32 %v1367, %v1386
        %v1390 = vadd.f32 %v1368, %v1387
        %1391 = vset.pattern.permute.xlu0 2
        %1392 = vperm.xlu0 %1391, %v1348
        %v1393 = vpop.permute.xlu0 %1392
        %v1395 = vlaneseq
        %v1396 = vshrl.u32 %v1395, 7
        %v1397 = vsub.s32 2, %v1396
        %v1398 = vrot.slane %v1342, %v1397
        %v1399 = vlaneseq
        %v1400 = vshrl.u32 %v1399, 7
        %v1401 = vsub.s32 2, %v1400
        %v1402 = vrot.slane %v1343, %v1401
        %v1403 = vlaneseq
        %v1404 = vshrl.u32 %v1403, 7
        %v1405 = vsub.s32 2, %v1404
        %v1406 = vrot.slane %v1344, %v1405
        %v1407 = vmul.f32 %v1393, %v1398
        %v1408 = vmul.f32 %v1393, %v1402
        %v1409 = vmul.f32 %v1393, %v1406
        %v1410 = vadd.f32 %v1388, %v1407
        %v1411 = vadd.f32 %v1389, %v1408
        %v1412 = vadd.f32 %v1390, %v1409
        %1413 = vset.pattern.permute.xlu0 3
        %1414 = vperm.xlu0 %1413, %v1348
        %v1415 = vpop.permute.xlu0 %1414
        %v1417 = vlaneseq
        %v1418 = vshrl.u32 %v1417, 7
        %v1419 = vsub.s32 3, %v1418
        %v1420 = vrot.slane %v1342, %v1419
        %v1421 = vlaneseq
        %v1422 = vshrl.u32 %v1421, 7
        %v1423 = vsub.s32 3, %v1422
        %v1424 = vrot.slane %v1343, %v1423
        %v1425 = vlaneseq
        %v1426 = vshrl.u32 %v1425, 7
        %v1427 = vsub.s32 3, %v1426
        %v1428 = vrot.slane %v1344, %v1427
        %v1429 = vmul.f32 %v1415, %v1420
        %v1430 = vmul.f32 %v1415, %v1424
        %v1431 = vmul.f32 %v1415, %v1428
        %v1432 = vadd.f32 %v1410, %v1429
        %v1433 = vadd.f32 %v1411, %v1430
        %v1434 = vadd.f32 %v1412, %v1431
        %1435 = vset.pattern.permute.xlu0 4
        %1436 = vperm.xlu0 %1435, %v1348
        %v1437 = vpop.permute.xlu0 %1436
        %v1439 = vlaneseq
        %v1440 = vshrl.u32 %v1439, 7
        %v1441 = vsub.s32 4, %v1440
        %v1442 = vrot.slane %v1342, %v1441
        %v1443 = vlaneseq
        %v1444 = vshrl.u32 %v1443, 7
        %v1445 = vsub.s32 4, %v1444
        %v1446 = vrot.slane %v1343, %v1445
        %v1447 = vlaneseq
        %v1448 = vshrl.u32 %v1447, 7
        %v1449 = vsub.s32 4, %v1448
        %v1450 = vrot.slane %v1344, %v1449
        %v1451 = vmul.f32 %v1437, %v1442
        %v1452 = vmul.f32 %v1437, %v1446
        %v1453 = vmul.f32 %v1437, %v1450
        %v1454 = vadd.f32 %v1432, %v1451
        %v1455 = vadd.f32 %v1433, %v1452
        %v1456 = vadd.f32 %v1434, %v1453
        %1457 = vset.pattern.permute.xlu0 5
        %1458 = vperm.xlu0 %1457, %v1348
        %v1459 = vpop.permute.xlu0 %1458
        %v1461 = vlaneseq
        %v1462 = vshrl.u32 %v1461, 7
        %v1463 = vsub.s32 5, %v1462
        %v1464 = vrot.slane %v1342, %v1463
        %v1465 = vlaneseq
        %v1466 = vshrl.u32 %v1465, 7
        %v1467 = vsub.s32 5, %v1466
        %v1468 = vrot.slane %v1343, %v1467
        %v1469 = vlaneseq
        %v1470 = vshrl.u32 %v1469, 7
        %v1471 = vsub.s32 5, %v1470
        %v1472 = vrot.slane %v1344, %v1471
        %v1473 = vmul.f32 %v1459, %v1464
        %v1474 = vmul.f32 %v1459, %v1468
        %v1475 = vmul.f32 %v1459, %v1472
        %v1476 = vadd.f32 %v1454, %v1473
        %v1477 = vadd.f32 %v1455, %v1474
        %v1478 = vadd.f32 %v1456, %v1475
        %1479 = vset.pattern.permute.xlu0 6
        %1480 = vperm.xlu0 %1479, %v1348
        %v1481 = vpop.permute.xlu0 %1480
        %v1483 = vlaneseq
        %v1484 = vshrl.u32 %v1483, 7
        %v1485 = vsub.s32 6, %v1484
        %v1486 = vrot.slane %v1342, %v1485
        %v1487 = vlaneseq
        %v1488 = vshrl.u32 %v1487, 7
        %v1489 = vsub.s32 6, %v1488
        %v1490 = vrot.slane %v1343, %v1489
        %v1491 = vlaneseq
        %v1492 = vshrl.u32 %v1491, 7
        %v1493 = vsub.s32 6, %v1492
        %v1494 = vrot.slane %v1344, %v1493
        %v1495 = vmul.f32 %v1481, %v1486
        %v1496 = vmul.f32 %v1481, %v1490
        %v1497 = vmul.f32 %v1481, %v1494
        %v1498 = vadd.f32 %v1476, %v1495
        %v1499 = vadd.f32 %v1477, %v1496
        %v1500 = vadd.f32 %v1478, %v1497
        %1501 = vset.pattern.permute.xlu0 7
        %1502 = vperm.xlu0 %1501, %v1348
        %v1503 = vpop.permute.xlu0 %1502
        %v1505 = vlaneseq
        %v1506 = vshrl.u32 %v1505, 7
        %v1507 = vsub.s32 7, %v1506
        %v1508 = vrot.slane %v1342, %v1507
        %v1509 = vlaneseq
        %v1510 = vshrl.u32 %v1509, 7
        %v1511 = vsub.s32 7, %v1510
        %v1512 = vrot.slane %v1343, %v1511
        %v1513 = vlaneseq
        %v1514 = vshrl.u32 %v1513, 7
        %v1515 = vsub.s32 7, %v1514
        %v1516 = vrot.slane %v1344, %v1515
        %v1517 = vmul.f32 %v1503, %v1508
        %v1518 = vmul.f32 %v1503, %v1512
        %v1519 = vmul.f32 %v1503, %v1516
        %v1520 = vadd.f32 %v1498, %v1517
        %v1521 = vadd.f32 %v1499, %v1518
        %v1522 = vadd.f32 %v1500, %v1519
        %1523 = vset.pattern.permute.xlu0 8
        %1524 = vperm.xlu0 %1523, %v1348
        %v1525 = vpop.permute.xlu0 %1524
        %v1527 = vlaneseq
        %v1528 = vshrl.u32 %v1527, 7
        %v1529 = vsub.s32 0, %v1528
        %v1530 = vrot.slane %v1345, %v1529
        %v1531 = vlaneseq
        %v1532 = vshrl.u32 %v1531, 7
        %v1533 = vsub.s32 0, %v1532
        %v1534 = vrot.slane %v1346, %v1533
        %v1535 = vlaneseq
        %v1536 = vshrl.u32 %v1535, 7
        %v1537 = vsub.s32 0, %v1536
        %v1538 = vrot.slane %v1347, %v1537
        %v1539 = vmul.f32 %v1525, %v1530
        %v1540 = vmul.f32 %v1525, %v1534
        %v1541 = vmul.f32 %v1525, %v1538
        %v1542 = vadd.f32 %v1520, %v1539
        %v1543 = vadd.f32 %v1521, %v1540
        %v1544 = vadd.f32 %v1522, %v1541
        %1545 = vset.pattern.permute.xlu0 9
        %1546 = vperm.xlu0 %1545, %v1348
        %v1547 = vpop.permute.xlu0 %1546
        %v1549 = vlaneseq
        %v1550 = vshrl.u32 %v1549, 7
        %v1551 = vsub.s32 1, %v1550
        %v1552 = vrot.slane %v1345, %v1551
        %v1553 = vlaneseq
        %v1554 = vshrl.u32 %v1553, 7
        %v1555 = vsub.s32 1, %v1554
        %v1556 = vrot.slane %v1346, %v1555
        %v1557 = vlaneseq
        %v1558 = vshrl.u32 %v1557, 7
        %v1559 = vsub.s32 1, %v1558
        %v1560 = vrot.slane %v1347, %v1559
        %v1561 = vmul.f32 %v1547, %v1552
        %v1562 = vmul.f32 %v1547, %v1556
        %v1563 = vmul.f32 %v1547, %v1560
        %v1564 = vadd.f32 %v1542, %v1561
        %v1565 = vadd.f32 %v1543, %v1562
        %v1566 = vadd.f32 %v1544, %v1563
        %1567 = vset.pattern.permute.xlu0 10
        %1568 = vperm.xlu0 %1567, %v1348
        %v1569 = vpop.permute.xlu0 %1568
        %v1571 = vlaneseq
        %v1572 = vshrl.u32 %v1571, 7
        %v1573 = vsub.s32 2, %v1572
        %v1574 = vrot.slane %v1345, %v1573
        %v1575 = vlaneseq
        %v1576 = vshrl.u32 %v1575, 7
        %v1577 = vsub.s32 2, %v1576
        %v1578 = vrot.slane %v1346, %v1577
        %v1579 = vlaneseq
        %v1580 = vshrl.u32 %v1579, 7
        %v1581 = vsub.s32 2, %v1580
        %v1582 = vrot.slane %v1347, %v1581
        %v1583 = vmul.f32 %v1569, %v1574
        %v1584 = vmul.f32 %v1569, %v1578
        %v1585 = vmul.f32 %v1569, %v1582
        %v1586 = vadd.f32 %v1564, %v1583
        %v1587 = vadd.f32 %v1565, %v1584
        %v1588 = vadd.f32 %v1566, %v1585
        %1589 = vset.pattern.permute.xlu0 11
        %1590 = vperm.xlu0 %1589, %v1348
        %v1591 = vpop.permute.xlu0 %1590
        %v1593 = vlaneseq
        %v1594 = vshrl.u32 %v1593, 7
        %v1595 = vsub.s32 3, %v1594
        %v1596 = vrot.slane %v1345, %v1595
        %v1597 = vlaneseq
        %v1598 = vshrl.u32 %v1597, 7
        %v1599 = vsub.s32 3, %v1598
        %v1600 = vrot.slane %v1346, %v1599
        %v1601 = vlaneseq
        %v1602 = vshrl.u32 %v1601, 7
        %v1603 = vsub.s32 3, %v1602
        %v1604 = vrot.slane %v1347, %v1603
        %v1605 = vmul.f32 %v1591, %v1596
        %v1606 = vmul.f32 %v1591, %v1600
        %v1607 = vmul.f32 %v1591, %v1604
        %v1608 = vadd.f32 %v1586, %v1605
        %v1609 = vadd.f32 %v1587, %v1606
        %v1610 = vadd.f32 %v1588, %v1607
        %1611 = vset.pattern.permute.xlu0 12
        %1612 = vperm.xlu0 %1611, %v1348
        %v1613 = vpop.permute.xlu0 %1612
        %v1615 = vlaneseq
        %v1616 = vshrl.u32 %v1615, 7
        %v1617 = vsub.s32 4, %v1616
        %v1618 = vrot.slane %v1345, %v1617
        %v1619 = vlaneseq
        %v1620 = vshrl.u32 %v1619, 7
        %v1621 = vsub.s32 4, %v1620
        %v1622 = vrot.slane %v1346, %v1621
        %v1623 = vlaneseq
        %v1624 = vshrl.u32 %v1623, 7
        %v1625 = vsub.s32 4, %v1624
        %v1626 = vrot.slane %v1347, %v1625
        %v1627 = vmul.f32 %v1613, %v1618
        %v1628 = vmul.f32 %v1613, %v1622
        %v1629 = vmul.f32 %v1613, %v1626
        %v1630 = vadd.f32 %v1608, %v1627
        %v1631 = vadd.f32 %v1609, %v1628
        %v1632 = vadd.f32 %v1610, %v1629
        %1633 = vset.pattern.permute.xlu0 13
        %1634 = vperm.xlu0 %1633, %v1348
        %v1635 = vpop.permute.xlu0 %1634
        %v1637 = vlaneseq
        %v1638 = vshrl.u32 %v1637, 7
        %v1639 = vsub.s32 5, %v1638
        %v1640 = vrot.slane %v1345, %v1639
        %v1641 = vlaneseq
        %v1642 = vshrl.u32 %v1641, 7
        %v1643 = vsub.s32 5, %v1642
        %v1644 = vrot.slane %v1346, %v1643
        %v1645 = vlaneseq
        %v1646 = vshrl.u32 %v1645, 7
        %v1647 = vsub.s32 5, %v1646
        %v1648 = vrot.slane %v1347, %v1647
        %v1649 = vmul.f32 %v1635, %v1640
        %v1650 = vmul.f32 %v1635, %v1644
        %v1651 = vmul.f32 %v1635, %v1648
        %v1652 = vadd.f32 %v1630, %v1649
        %v1653 = vadd.f32 %v1631, %v1650
        %v1654 = vadd.f32 %v1632, %v1651
        %1655 = vset.pattern.permute.xlu0 14
        %1656 = vperm.xlu0 %1655, %v1348
        %v1657 = vpop.permute.xlu0 %1656
        %v1659 = vlaneseq
        %v1660 = vshrl.u32 %v1659, 7
        %v1661 = vsub.s32 6, %v1660
        %v1662 = vrot.slane %v1345, %v1661
        %v1663 = vlaneseq
        %v1664 = vshrl.u32 %v1663, 7
        %v1665 = vsub.s32 6, %v1664
        %v1666 = vrot.slane %v1346, %v1665
        %v1667 = vlaneseq
        %v1668 = vshrl.u32 %v1667, 7
        %v1669 = vsub.s32 6, %v1668
        %v1670 = vrot.slane %v1347, %v1669
        %v1671 = vmul.f32 %v1657, %v1662
        %v1672 = vmul.f32 %v1657, %v1666
        %v1673 = vmul.f32 %v1657, %v1670
        %v1674 = vadd.f32 %v1652, %v1671
        %v1675 = vadd.f32 %v1653, %v1672
        %v1676 = vadd.f32 %v1654, %v1673
        %1677 = vset.pattern.permute.xlu0 15
        %1678 = vperm.xlu0 %1677, %v1348
        %v1679 = vpop.permute.xlu0 %1678
        %v1681 = vlaneseq
        %v1682 = vshrl.u32 %v1681, 7
        %v1683 = vsub.s32 7, %v1682
        %v1684 = vrot.slane %v1345, %v1683
        %v1685 = vlaneseq
        %v1686 = vshrl.u32 %v1685, 7
        %v1687 = vsub.s32 7, %v1686
        %v1688 = vrot.slane %v1346, %v1687
        %v1689 = vlaneseq
        %v1690 = vshrl.u32 %v1689, 7
        %v1691 = vsub.s32 7, %v1690
        %v1692 = vrot.slane %v1347, %v1691
        %v1693 = vmul.f32 %v1679, %v1684
        %v1694 = vmul.f32 %v1679, %v1688
        %v1695 = vmul.f32 %v1679, %v1692
        %v1696 = vadd.f32 %v1674, %v1693
        %v1697 = vadd.f32 %v1675, %v1694
        %v1698 = vadd.f32 %v1676, %v1695
        %v1702 = vcombine.low %v1696, %v1697
        %1703 = vrot.lane.b32.xlu0 %v1702, 17
        %v1704 = vpop.permute.xlu0 %1703
        %1705 = vrot.lane.b32.xlu0 %v1698, 17
        %v1706 = vpop.permute.xlu0 %1705
        %v1707 = vrot.slane %v1704, 4
        %v1708 = vrot.slane %v1706, 4
        %vm1709 = vcmask 1043456
        %v1710 = vsel %vm1709, %v1707, %v1708
        %v1711 = vsel %vm1100, %v1704, %v1710
        %1713 = vst [vmem:[%s244] sm:$0xff] %v1711
        %s1714 = sand.u32 %s159, 1
        %s1715 = scalar_lea.sflag [#allocation4], %s1714
        %s1716 = sand.u32 %s159, 1
        %s1717 = smul.addr %s1716, 8
        %s1718 = scalar_lea.vmem [#allocation3], %s1717
        // Predicated region
        $region45: #{tpu_custom_call.1} parent=43 // pred_check
          %p1719 = pneg %p169
        $region46: #{tpu_custom_call.1} parent=43 // pred_check_branch
          %1721 = sbr.rel (%p1719) target = $region48
        $region47: #{tpu_custom_call.1} parent=43 // pred_region
          %s1723 = ssub.s32 128, 128
          %1724 = vsyncadd %s1715, %s1723
          %s1725 = smul.addr %s20, 2
          %s1726 = smul.addr %s1725, 64
          %s1727 = scalar_lea.hbm %s6, %s1726
          %s1729 = sshll.u32 %s1718, 4
          %s1730 = int_to_ptr.vmem [resolvable:$true] %s1729
          %1732 = dma.vmem_to_hbm [thread:$0]  %s1730, 128, %s1727, %s1715
        $region48: #{tpu_custom_call.1} parent=43 // pred_fallthru
          _
      $region44: #{tpu_custom_call.1} parent=5 // pred_fallthru
        _
      %p1733 = scmp.le.s32.totalorder 2, %s15
      // Predicated region
      $region49: #{tpu_custom_call.1} parent=5 // pred_check
        %p1734 = pneg %p1733
      $region50: #{tpu_custom_call.1} parent=5 // pred_check_branch
        %1736 = sbr.rel (%p1734) target = $region52
      $region51: #{tpu_custom_call.1} parent=5 // pred_region
        %s1737 = ssub.s32 %s15, 2
        // Predicated region
        $region53: #{tpu_custom_call.1} parent=51 // pred_check
          %p1738 = pneg %p175
        $region54: #{tpu_custom_call.1} parent=51 // pred_check_branch
          %1740 = sbr.rel (%p1738) target = $region56
        $region55: #{tpu_custom_call.1} parent=51 // pred_region
          %s1741 = sand.u32 %s160, 1
          %s1742 = scalar_lea.sflag [#allocation4], %s1741
          %s1743 = sand.u32 %s160, 1
          %s1744 = smul.addr %s1743, 8
          %s1745 = scalar_lea.vmem [#allocation3], %s1744
          %1746 = dma.done %s1742, 128
        $region56: #{tpu_custom_call.1} parent=51 // pred_fallthru
          _
      $region52: #{tpu_custom_call.1} parent=5 // pred_fallthru
        _
    $region6: #{tpu_custom_call.1} parent=1 // loop_footer
      %s19 = sadd.s32 1, %s15
    $region7: #{tpu_custom_call.1} parent=1 // loop_footer_branch
      %14 = sbr.rel target = $region3
    $region8: #{tpu_custom_call.1} parent=1 // loop_exit
      _
    %1747 = vsyncpa [#allocation4], 1
    %s1748 = scalar_lea.sflag [#allocation4], 1
    %1749 = vsyncpa %s1748, 1

</llo_original>
